<compile_context>
chip_gen: v5e
topology: v5e:2x2
jax: 0.10.0
libtpu: 0.0.40
codegen_flags: <defaults>
</compile_context>

<pallas_src>
import math

import jax
import jax.numpy as jnp
from jax.experimental import pallas as pl
from jax.experimental.pallas import tpu as pltpu

EPS = 1e-5
LANES = 128


def _round_up(x, m):
    return (x + m - 1) // m * m


def conv_bn_relu(x_nchw, weight, gamma, beta, ks=3, stride=1, padding=1,
                 target_rows=1024, out_dtype=None):
    """ConvBNReLU forward (training-mode BatchNorm) as two Pallas passes.

    x_nchw: (N, Cin, H, W); weight: (Cout, Cin, KH, KW) like nn.Conv2d.
    target_rows: desired rows of the (M, Cpad) output matrix per grid step
    (512-1024 recommended; halved automatically when it would not fit).
    """
    N, Cin, H, W = x_nchw.shape
    Cout, wc, KH, KW = weight.shape
    assert KH == ks and KW == ks and wc == Cin
    assert stride == 1  # TODO(synk): stride=2 ConvBNReLU blocks not implemented.

    out_dtype = x_nchw.dtype if out_dtype is None else out_dtype
    out_itemsize = jnp.dtype(out_dtype).itemsize

    # Output spatial dims (stride=1, dilation=1).
    Ho = H + 2 * padding - (KH - 1)
    Wo = W + 2 * padding - (KW - 1)
    Wp = W + 2 * padding
    Cpad = _round_up(Cout, LANES)          # lane-dense output channels
    M_real = N * Ho * Wo                   # real output pixels (for BN mean/var)

    # ---- row-tile selection ---------------------------------------------------
    # tile_h output rows per grid step; tile_m = tile_h*Wo must be a multiple of
    # 8 (sublane constraint of the (tile_m, Cpad) blocks), hence granularity q.
    q = 8 // math.gcd(Wo, 8)
    tile_h = max(1, target_rows // max(Wo, 1))
    if N == 1:
        # keep >= 2 grid steps where possible so both v7x TensorCores get work
        tile_h = min(tile_h, max(1, -(-Ho // 2)))
    tile_h = max(q, (tile_h // q) * q)
    tile_h = min(tile_h, _round_up(Ho, q))
    Th = -(-Ho // tile_h)                  # row tiles per image
    Ho_p = Th * tile_h                     # padded output height
    G = N * Th                             # grid size (both passes)
    tile_m = tile_h * Wo
    Mp = G * tile_m                        # = N * Ho_p * Wo
    halo_h = tile_h + KH - 1
    needs_mask = (Ho_p != Ho)              # last tile per image is partial

    # ---- host glue: NCHW -> NHWC (bf16), pad, halo'd row-tile staging ---------
    x = jnp.transpose(x_nchw, (0, 2, 3, 1)).astype(jnp.bfloat16)
    xp = jnp.pad(x, ((0, 0), (padding, padding + Ho_p - Ho),
                     (padding, padding), (0, 0)))          # (N, Ho_p+KH-1, Wp, Cin)
    xh = jnp.stack([xp[:, t * tile_h: t * tile_h + halo_h] for t in range(Th)],
                   axis=1)                                  # (N, Th, halo_h, Wp, Cin)
    xh = xh.reshape(G, halo_h, Wp, Cin)

    # weight (Cout, Cin, kh, kw) -> (KH*KW, Cin, Cpad): tap-major, lane-dense Cout.
    wt = jnp.transpose(weight, (2, 3, 1, 0)).reshape(KH * KW, Cin, Cout)
    wt = jnp.pad(wt, ((0, 0), (0, 0), (0, Cpad - Cout))).astype(jnp.bfloat16)

    gamma_p = jnp.pad(gamma.astype(jnp.float32), (0, Cpad - Cout))
    beta_p = jnp.pad(beta.astype(jnp.float32), (0, Cpad - Cout))
    gb = jnp.stack([gamma_p, beta_p], axis=0)               # (2, Cpad) f32

    # ---- pass 1: implicit-GEMM conv + per-tile channel sum / sum-of-squares ----
    def _conv_stats_kernel(x_ref, w_ref, conv_ref, stat_ref):
        # x_ref:    (1, halo_h, Wp, Cin) bf16 halo'd input row tile
        # w_ref:    (KH*KW, Cin, Cpad)   bf16, resident (constant index map)
        # conv_ref: (tile_m, Cpad)       bf16 conv output tile
        # stat_ref: (1, 2, Cpad)         f32 per-tile [sum, sum_sq]
        x_blk = x_ref[0]                                    # (halo_h, Wp, Cin)
        acc = jnp.zeros((tile_m, Cpad), jnp.float32)
        for kh in range(KH):
            for kw in range(KW):
                lhs = x_blk[kh:kh + tile_h, kw:kw + Wo, :].reshape(tile_m, Cin)
                acc = acc + jnp.dot(lhs, w_ref[kh * KW + kw],
                                    preferred_element_type=jnp.float32)
        if needs_mask:
            # zero the rows of the partial last tile per image so they do not
            # pollute the BN statistics (they are sliced away on the host).
            t = pl.program_id(0) % Th
            valid_rows = jnp.minimum(tile_h, Ho - t * tile_h) * Wo
            row_id = jax.lax.broadcasted_iota(jnp.int32, (tile_m, 1), 0)
            acc = jnp.where(row_id < valid_rows, acc, 0.0)
        stat_ref[0, 0:1, :] = jnp.sum(acc, axis=0, keepdims=True)
        stat_ref[0, 1:2, :] = jnp.sum(acc * acc, axis=0, keepdims=True)
        conv_ref[...] = acc.astype(conv_ref.dtype)

    p1_need = (2 * halo_h * Wp * Cin * 2          # input tile, double buffered
               + 2 * KH * KW * Cin * Cpad * 2     # resident weight (2 bufs today)
               + 2 * tile_m * Cpad * 2            # bf16 conv tile, double buffered
               + 2 * 2 * Cpad * 4                 # stats tile
               + tile_m * Cpad * 4                # f32 accumulator
               + 2 * tile_m * Cin * 2)            # per-tap lhs staging slack
    p1_limit = int(min(max(2 * p1_need, 32 << 20), 64 << 20))

    conv_bf16, stats = pl.pallas_call(
        _conv_stats_kernel,
        out_shape=(jax.ShapeDtypeStruct((Mp, Cpad), jnp.bfloat16),
                   jax.ShapeDtypeStruct((G, 2, Cpad), jnp.float32)),
        grid=(G,),
        in_specs=[
            pl.BlockSpec((1, halo_h, Wp, Cin), lambda i: (i, 0, 0, 0)),
            pl.BlockSpec((KH * KW, Cin, Cpad), lambda i: (0, 0, 0)),
        ],
        out_specs=(
            pl.BlockSpec((tile_m, Cpad), lambda i: (i, 0)),
            pl.BlockSpec((1, 2, Cpad), lambda i: (i, 0, 0)),
        ),
        compiler_params=pltpu.CompilerParams(
            dimension_semantics=("parallel",),
            vmem_limit_bytes=p1_limit),
        cost_estimate=pl.CostEstimate(
            flops=2 * Mp * KH * KW * Cin * Cpad,
            transcendentals=0,
            bytes_accessed=(G * halo_h * Wp * Cin * 2 + KH * KW * Cin * Cpad * 2
                            + Mp * Cpad * 2 + G * 2 * Cpad * 4)),
    )(xh, wt)

    # ---- pass 2: fold stats -> scale/shift in-kernel, apply BN + ReLU ---------
    inv_m = 1.0 / float(M_real)

    def _bn_relu_kernel(conv_ref, stat_ref, gb_ref, o_ref):
        # conv_ref: (tile_m, Cpad) bf16 ; stat_ref: (G, 2, Cpad) f32 resident
        # gb_ref:   (2, Cpad) f32 resident ; o_ref: (tile_m, Cpad) out_dtype
        total = jnp.sum(stat_ref[...], axis=0)              # (2, Cpad), tiny
        mean = total[0:1, :] * inv_m
        var = jnp.maximum(total[1:2, :] * inv_m - mean * mean, 0.0)
        inv = jax.lax.rsqrt(var + EPS)                      # EUP slot
        scale = gb_ref[0:1, :] * inv
        shift = gb_ref[1:2, :] - mean * scale
        y = conv_ref[...].astype(jnp.float32) * scale + shift
        o_ref[...] = jnp.maximum(y, 0.0).astype(o_ref.dtype)

    p2_need = (2 * tile_m * Cpad * 2 + 2 * G * 2 * Cpad * 4 + 2 * 2 * Cpad * 4
               + 2 * tile_m * Cpad * out_itemsize + tile_m * Cpad * 4)
    p2_limit = int(min(max(2 * p2_need, 32 << 20), 64 << 20))

    out2d = pl.pallas_call(
        _bn_relu_kernel,
        out_shape=jax.ShapeDtypeStruct((Mp, Cpad), out_dtype),
        grid=(G,),
        in_specs=[
            pl.BlockSpec((tile_m, Cpad), lambda i: (i, 0)),
            pl.BlockSpec((G, 2, Cpad), lambda i: (0, 0, 0)),
            pl.BlockSpec((2, Cpad), lambda i: (0, 0)),
        ],
        out_specs=pl.BlockSpec((tile_m, Cpad), lambda i: (i, 0)),
        compiler_params=pltpu.CompilerParams(
            dimension_semantics=("parallel",),
            vmem_limit_bytes=p2_limit),
        cost_estimate=pl.CostEstimate(
            flops=3 * Mp * Cpad,
            transcendentals=Cpad,
            bytes_accessed=(Mp * Cpad * 2 + G * 2 * Cpad * 4 + 2 * Cpad * 4
                            + Mp * Cpad * out_itemsize)),
    )(conv_bf16, stats, gb)

    # ---- glue: drop row/channel padding, back to NCHW -------------------------
    out = out2d.reshape(N, Ho_p, Wo, Cpad)[:, :Ho, :, :Cout]
    return jnp.transpose(out, (0, 3, 1, 2))


def _reference(x, weight, gamma, beta, padding=1):
    """Pure-f32 PyTorch training-mode ConvBNReLU semantics."""
    conv = jax.lax.conv_general_dilated(
        x, weight, window_strides=(1, 1), padding=((padding, padding),) * 2,
        dimension_numbers=("NCHW", "OIHW", "NCHW"),
        precision=jax.lax.Precision.HIGHEST)
    mean = jnp.mean(conv, axis=(0, 2, 3), keepdims=True)
    var = jnp.mean((conv - mean) ** 2, axis=(0, 2, 3), keepdims=True)
    y = (conv - mean) * jax.lax.rsqrt(var + EPS)
    y = y * gamma.reshape(1, -1, 1, 1) + beta.reshape(1, -1, 1, 1)
    return jnp.maximum(y, 0.0)


def _check(x, weight, gamma, beta, **kw):
    out = jax.block_until_ready(conv_bn_relu(x, weight, gamma, beta, **kw))
    ref = _reference(x, weight, gamma, beta)
    assert out.shape == ref.shape, (out.shape, ref.shape)
    max_err = float(jnp.max(jnp.abs(out - ref)))
    # Tolerance relaxed vs a pure-f32 path: bf16 MXU operands + bf16 conv
    # intermediate (f32 accumulation / f32 BN statistics).
    assert jnp.allclose(out, ref, atol=5e-2, rtol=5e-2), max_err
    return max_err


if __name__ == "__main__":
    key = jax.random.PRNGKey(0)
    kx, kw, kg, kb = jax.random.split(key, 4)

    # Primary test at the module's small reference shapes.
    N, Cin, H, W = 2, 4, 16, 16
    Cout, ks = 8, 3
    x = jax.random.normal(kx, (N, Cin, H, W), dtype=jnp.float32)
    fan_in = Cin * ks * ks
    weight = jax.random.normal(kw, (Cout, Cin, ks, ks), jnp.float32) * (1.0 / fan_in) ** 0.5
    gamma = jax.random.uniform(kg, (Cout,), jnp.float32, minval=0.5, maxval=1.5)
    beta = jax.random.normal(kb, (Cout,), jnp.float32) * 0.1
    _check(x, weight, gamma, beta, ks=ks, stride=1, padding=1)

    # Secondary test exercising the partial-last-tile mask path (Ho % tile_h != 0),
    # N=1, and channel counts that are not lane/sublane multiples.
    N2, Cin2, H2, W2, Cout2 = 1, 3, 13, 16, 5
    k2 = jax.random.split(jax.random.PRNGKey(0), 4)
    x2 = jax.random.normal(k2[0], (N2, Cin2, H2, W2), dtype=jnp.float32)
    w2 = jax.random.normal(k2[1], (Cout2, Cin2, ks, ks), jnp.float32) * (1.0 / (Cin2 * ks * ks)) ** 0.5
    g2 = jax.random.uniform(k2[2], (Cout2,), jnp.float32, minval=0.5, maxval=1.5)
    b2 = jax.random.normal(k2[3], (Cout2,), jnp.float32) * 0.1
    _check(x2, w2, g2, b2, ks=ks, stride=1, padding=1, target_rows=64)

    print("KERNEL_OK")
</pallas_src>

<mosaic_0001>
module attributes {stable_mosaic.version = 11 : i64} {
  func.func @_conv_stats_kernel(%arg0: i32, %arg1: memref<1x18x18x4xbf16, #tpu.memory_space<vmem>>, %arg2: memref<9x4x128xbf16, #tpu.memory_space<vmem>>, %arg3: memref<256x128xbf16, #tpu.memory_space<vmem>>, %arg4: memref<1x2x128xf32, #tpu.memory_space<vmem>>) attributes {dimension_semantics = [#tpu.dimension_semantics<parallel>], iteration_bounds = array<i64: 2>, scalar_prefetch = 0 : i64, scratch_operands = 0 : i64, tpu.core_type = #tpu.core_type<tc>, window_params = [{transform_indices = @transform_0, window_bounds = array<i64: 1, 18, 18, 4>}, {pipeline_mode = #tpu.pipeline_mode<synchronous>, transform_indices = @transform_1, window_bounds = array<i64: 9, 4, 128>}, {transform_indices = @transform_2, window_bounds = array<i64: 256, 128>}, {transform_indices = @transform_3, window_bounds = array<i64: 1, 2, 128>}]} {
    %c0 = arith.constant 0 : index
    %c0_0 = arith.constant 0 : index
    %c0_1 = arith.constant 0 : index
    %c0_2 = arith.constant 0 : index
    %0 = vector.load %arg1[%c0, %c0_0, %c0_1, %c0_2] : memref<1x18x18x4xbf16, #tpu.memory_space<vmem>>, vector<1x18x18x4xbf16>
    %1 = vector.shape_cast %0 : vector<1x18x18x4xbf16> to vector<18x18x4xbf16>
    %cst = arith.constant 0.000000e+00 : f32
    %2 = vector.broadcast %cst : f32 to vector<256x128xf32>
    %3 = vector.extract_strided_slice %1 {offsets = [0, 0, 0], sizes = [16, 16, 4], strides = [1, 1, 1]} : vector<18x18x4xbf16> to vector<16x16x4xbf16>
    %4 = vector.shape_cast %3 : vector<16x16x4xbf16> to vector<256x4xbf16>
    %c0_3 = arith.constant 0 : index
    %c0_4 = arith.constant 0 : index
    %c0_5 = arith.constant 0 : index
    %5 = vector.load %arg2[%c0_3, %c0_4, %c0_5] : memref<9x4x128xbf16, #tpu.memory_space<vmem>>, vector<1x4x128xbf16>
    %6 = vector.shape_cast %5 : vector<1x4x128xbf16> to vector<4x128xbf16>
    %cst_6 = arith.constant dense<0.000000e+00> : vector<256x128xf32>
    %7 = tpu.matmul %4, %6, %cst_6 {dimension_numbers = #tpu.dot_dimension_numbers<[1], [0], [0], [1], [0, 0, 1, 1], [], []>} : vector<256x4xbf16>, vector<4x128xbf16>, vector<256x128xf32> -> vector<256x128xf32>
    %8 = arith.addf %2, %7 : vector<256x128xf32>
    %9 = vector.extract_strided_slice %1 {offsets = [0, 1, 0], sizes = [16, 16, 4], strides = [1, 1, 1]} : vector<18x18x4xbf16> to vector<16x16x4xbf16>
    %10 = vector.shape_cast %9 : vector<16x16x4xbf16> to vector<256x4xbf16>
    %c1 = arith.constant 1 : index
    %c0_7 = arith.constant 0 : index
    %c0_8 = arith.constant 0 : index
    %11 = vector.load %arg2[%c1, %c0_7, %c0_8] : memref<9x4x128xbf16, #tpu.memory_space<vmem>>, vector<1x4x128xbf16>
    %12 = vector.shape_cast %11 : vector<1x4x128xbf16> to vector<4x128xbf16>
    %cst_9 = arith.constant dense<0.000000e+00> : vector<256x128xf32>
    %13 = tpu.matmul %10, %12, %cst_9 {dimension_numbers = #tpu.dot_dimension_numbers<[1], [0], [0], [1], [0, 0, 1, 1], [], []>} : vector<256x4xbf16>, vector<4x128xbf16>, vector<256x128xf32> -> vector<256x128xf32>
    %14 = arith.addf %8, %13 : vector<256x128xf32>
    %15 = vector.extract_strided_slice %1 {offsets = [0, 2, 0], sizes = [16, 16, 4], strides = [1, 1, 1]} : vector<18x18x4xbf16> to vector<16x16x4xbf16>
    %16 = vector.shape_cast %15 : vector<16x16x4xbf16> to vector<256x4xbf16>
    %c2 = arith.constant 2 : index
    %c0_10 = arith.constant 0 : index
    %c0_11 = arith.constant 0 : index
    %17 = vector.load %arg2[%c2, %c0_10, %c0_11] : memref<9x4x128xbf16, #tpu.memory_space<vmem>>, vector<1x4x128xbf16>
    %18 = vector.shape_cast %17 : vector<1x4x128xbf16> to vector<4x128xbf16>
    %cst_12 = arith.constant dense<0.000000e+00> : vector<256x128xf32>
    %19 = tpu.matmul %16, %18, %cst_12 {dimension_numbers = #tpu.dot_dimension_numbers<[1], [0], [0], [1], [0, 0, 1, 1], [], []>} : vector<256x4xbf16>, vector<4x128xbf16>, vector<256x128xf32> -> vector<256x128xf32>
    %20 = arith.addf %14, %19 : vector<256x128xf32>
    %21 = vector.extract_strided_slice %1 {offsets = [1, 0, 0], sizes = [16, 16, 4], strides = [1, 1, 1]} : vector<18x18x4xbf16> to vector<16x16x4xbf16>
    %22 = vector.shape_cast %21 : vector<16x16x4xbf16> to vector<256x4xbf16>
    %c3 = arith.constant 3 : index
    %c0_13 = arith.constant 0 : index
    %c0_14 = arith.constant 0 : index
    %23 = vector.load %arg2[%c3, %c0_13, %c0_14] : memref<9x4x128xbf16, #tpu.memory_space<vmem>>, vector<1x4x128xbf16>
    %24 = vector.shape_cast %23 : vector<1x4x128xbf16> to vector<4x128xbf16>
    %cst_15 = arith.constant dense<0.000000e+00> : vector<256x128xf32>
    %25 = tpu.matmul %22, %24, %cst_15 {dimension_numbers = #tpu.dot_dimension_numbers<[1], [0], [0], [1], [0, 0, 1, 1], [], []>} : vector<256x4xbf16>, vector<4x128xbf16>, vector<256x128xf32> -> vector<256x128xf32>
    %26 = arith.addf %20, %25 : vector<256x128xf32>
    %27 = vector.extract_strided_slice %1 {offsets = [1, 1, 0], sizes = [16, 16, 4], strides = [1, 1, 1]} : vector<18x18x4xbf16> to vector<16x16x4xbf16>
    %28 = vector.shape_cast %27 : vector<16x16x4xbf16> to vector<256x4xbf16>
    %c4 = arith.constant 4 : index
    %c0_16 = arith.constant 0 : index
    %c0_17 = arith.constant 0 : index
    %29 = vector.load %arg2[%c4, %c0_16, %c0_17] : memref<9x4x128xbf16, #tpu.memory_space<vmem>>, vector<1x4x128xbf16>
    %30 = vector.shape_cast %29 : vector<1x4x128xbf16> to vector<4x128xbf16>
    %cst_18 = arith.constant dense<0.000000e+00> : vector<256x128xf32>
    %31 = tpu.matmul %28, %30, %cst_18 {dimension_numbers = #tpu.dot_dimension_numbers<[1], [0], [0], [1], [0, 0, 1, 1], [], []>} : vector<256x4xbf16>, vector<4x128xbf16>, vector<256x128xf32> -> vector<256x128xf32>
    %32 = arith.addf %26, %31 : vector<256x128xf32>
    %33 = vector.extract_strided_slice %1 {offsets = [1, 2, 0], sizes = [16, 16, 4], strides = [1, 1, 1]} : vector<18x18x4xbf16> to vector<16x16x4xbf16>
    %34 = vector.shape_cast %33 : vector<16x16x4xbf16> to vector<256x4xbf16>
    %c5 = arith.constant 5 : index
    %c0_19 = arith.constant 0 : index
    %c0_20 = arith.constant 0 : index
    %35 = vector.load %arg2[%c5, %c0_19, %c0_20] : memref<9x4x128xbf16, #tpu.memory_space<vmem>>, vector<1x4x128xbf16>
    %36 = vector.shape_cast %35 : vector<1x4x128xbf16> to vector<4x128xbf16>
    %cst_21 = arith.constant dense<0.000000e+00> : vector<256x128xf32>
    %37 = tpu.matmul %34, %36, %cst_21 {dimension_numbers = #tpu.dot_dimension_numbers<[1], [0], [0], [1], [0, 0, 1, 1], [], []>} : vector<256x4xbf16>, vector<4x128xbf16>, vector<256x128xf32> -> vector<256x128xf32>
    %38 = arith.addf %32, %37 : vector<256x128xf32>
    %39 = vector.extract_strided_slice %1 {offsets = [2, 0, 0], sizes = [16, 16, 4], strides = [1, 1, 1]} : vector<18x18x4xbf16> to vector<16x16x4xbf16>
    %40 = vector.shape_cast %39 : vector<16x16x4xbf16> to vector<256x4xbf16>
    %c6 = arith.constant 6 : index
    %c0_22 = arith.constant 0 : index
    %c0_23 = arith.constant 0 : index
    %41 = vector.load %arg2[%c6, %c0_22, %c0_23] : memref<9x4x128xbf16, #tpu.memory_space<vmem>>, vector<1x4x128xbf16>
    %42 = vector.shape_cast %41 : vector<1x4x128xbf16> to vector<4x128xbf16>
    %cst_24 = arith.constant dense<0.000000e+00> : vector<256x128xf32>
    %43 = tpu.matmul %40, %42, %cst_24 {dimension_numbers = #tpu.dot_dimension_numbers<[1], [0], [0], [1], [0, 0, 1, 1], [], []>} : vector<256x4xbf16>, vector<4x128xbf16>, vector<256x128xf32> -> vector<256x128xf32>
    %44 = arith.addf %38, %43 : vector<256x128xf32>
    %45 = vector.extract_strided_slice %1 {offsets = [2, 1, 0], sizes = [16, 16, 4], strides = [1, 1, 1]} : vector<18x18x4xbf16> to vector<16x16x4xbf16>
    %46 = vector.shape_cast %45 : vector<16x16x4xbf16> to vector<256x4xbf16>
    %c7 = arith.constant 7 : index
    %c0_25 = arith.constant 0 : index
    %c0_26 = arith.constant 0 : index
    %47 = vector.load %arg2[%c7, %c0_25, %c0_26] : memref<9x4x128xbf16, #tpu.memory_space<vmem>>, vector<1x4x128xbf16>
    %48 = vector.shape_cast %47 : vector<1x4x128xbf16> to vector<4x128xbf16>
    %cst_27 = arith.constant dense<0.000000e+00> : vector<256x128xf32>
    %49 = tpu.matmul %46, %48, %cst_27 {dimension_numbers = #tpu.dot_dimension_numbers<[1], [0], [0], [1], [0, 0, 1, 1], [], []>} : vector<256x4xbf16>, vector<4x128xbf16>, vector<256x128xf32> -> vector<256x128xf32>
    %50 = arith.addf %44, %49 : vector<256x128xf32>
    %51 = vector.extract_strided_slice %1 {offsets = [2, 2, 0], sizes = [16, 16, 4], strides = [1, 1, 1]} : vector<18x18x4xbf16> to vector<16x16x4xbf16>
    %52 = vector.shape_cast %51 : vector<16x16x4xbf16> to vector<256x4xbf16>
    %c8 = arith.constant 8 : index
    %c0_28 = arith.constant 0 : index
    %c0_29 = arith.constant 0 : index
    %53 = vector.load %arg2[%c8, %c0_28, %c0_29] : memref<9x4x128xbf16, #tpu.memory_space<vmem>>, vector<1x4x128xbf16>
    %54 = vector.shape_cast %53 : vector<1x4x128xbf16> to vector<4x128xbf16>
    %cst_30 = arith.constant dense<0.000000e+00> : vector<256x128xf32>
    %55 = tpu.matmul %52, %54, %cst_30 {dimension_numbers = #tpu.dot_dimension_numbers<[1], [0], [0], [1], [0, 0, 1, 1], [], []>} : vector<256x4xbf16>, vector<4x128xbf16>, vector<256x128xf32> -> vector<256x128xf32>
    %56 = arith.addf %50, %55 : vector<256x128xf32>
    %cst_31 = arith.constant dense<0.000000e+00> : vector<128xf32>
    %57 = vector.multi_reduction <add>, %56, %cst_31 [0] : vector<256x128xf32> to vector<128xf32>
    %58 = vector.shape_cast %57 : vector<128xf32> to vector<1x128xf32>
    %c0_32 = arith.constant 0 : index
    %c0_33 = arith.constant 0 : index
    %c0_34 = arith.constant 0 : index
    %59 = vector.load %arg4[%c0_32, %c0_33, %c0_34] : memref<1x2x128xf32, #tpu.memory_space<vmem>>, vector<1x1x128xf32>
    %60 = vector.shape_cast %59 : vector<1x1x128xf32> to vector<1x128xf32>
    %61 = vector.shape_cast %58 : vector<1x128xf32> to vector<1x1x128xf32>
    tpu.vector_store %arg4[%c0_32, %c0_33, %c0_34], %61 {strides = array<i32>} : memref<1x2x128xf32, #tpu.memory_space<vmem>>, vector<1x1x128xf32>,
    %62 = arith.mulf %56, %56 : vector<256x128xf32>
    %cst_35 = arith.constant dense<0.000000e+00> : vector<128xf32>
    %63 = vector.multi_reduction <add>, %62, %cst_35 [0] : vector<256x128xf32> to vector<128xf32>
    %64 = vector.shape_cast %63 : vector<128xf32> to vector<1x128xf32>
    %c0_36 = arith.constant 0 : index
    %c1_37 = arith.constant 1 : index
    %c0_38 = arith.constant 0 : index
    %65 = vector.load %arg4[%c0_36, %c1_37, %c0_38] : memref<1x2x128xf32, #tpu.memory_space<vmem>>, vector<1x1x128xf32>
    %66 = vector.shape_cast %65 : vector<1x1x128xf32> to vector<1x128xf32>
    %67 = vector.shape_cast %64 : vector<1x128xf32> to vector<1x1x128xf32>
    tpu.vector_store %arg4[%c0_36, %c1_37, %c0_38], %67 {strides = array<i32>} : memref<1x2x128xf32, #tpu.memory_space<vmem>>, vector<1x1x128xf32>,
    %68 = arith.truncf %56 : vector<256x128xf32> to vector<256x128xbf16>
    %c0_39 = arith.constant 0 : index
    %c0_40 = arith.constant 0 : index
    %69 = vector.load %arg3[%c0_39, %c0_40] : memref<256x128xbf16, #tpu.memory_space<vmem>>, vector<256x128xbf16>
    tpu.vector_store %arg3[%c0_39, %c0_40], %68 {strides = array<i32>} : memref<256x128xbf16, #tpu.memory_space<vmem>>, vector<256x128xbf16>,
    return
  }
  func.func @transform_0(%arg0: i32) -> (i32, i32, i32, i32) {
    %c0_i32 = arith.constant 0 : i32
    %c0_i32_0 = arith.constant 0 : i32
    %c0_i32_1 = arith.constant 0 : i32
    %c0_i32_2 = arith.constant 0 : i32
    return %arg0, %c0_i32, %c0_i32_0, %c0_i32_1 : i32, i32, i32, i32
  }
  func.func @transform_1(%arg0: i32) -> (i32, i32, i32) {
    %c0_i32 = arith.constant 0 : i32
    %c0_i32_0 = arith.constant 0 : i32
    %c0_i32_1 = arith.constant 0 : i32
    %c0_i32_2 = arith.constant 0 : i32
    return %c0_i32, %c0_i32_0, %c0_i32_1 : i32, i32, i32
  }
  func.func @transform_2(%arg0: i32) -> (i32, i32) {
    %c0_i32 = arith.constant 0 : i32
    %c0_i32_0 = arith.constant 0 : i32
    return %arg0, %c0_i32 : i32, i32
  }
  func.func @transform_3(%arg0: i32) -> (i32, i32, i32) {
    %c0_i32 = arith.constant 0 : i32
    %c0_i32_0 = arith.constant 0 : i32
    %c0_i32_1 = arith.constant 0 : i32
    return %arg0, %c0_i32, %c0_i32_0 : i32, i32, i32
  }
}

</mosaic_0001>

<llo_original>
// kernel: tpu_custom_call.1
$region0: #{tpu_custom_call.1}
  #allocation0 [shape = 'u32[]', space=smem, size = 0x4, offset = 0x4, fixed_abs, tag = 'smem constant byte address 0x4 - core index']
  #allocation1 [shape = 'u32[72,128]{1,0:T(1,128)}', space=vmem, size = 0x9000, scoped, tag = 'internal scratch']
  %s0 = inlined_call_operand.vmem [shape: bf16[2,18,18,4], index: 0, kind: input, shape index: {}]
  %s1 = inlined_call_operand.vmem [shape: bf16[9,4,128], index: 1, kind: input, shape index: {}]
  %s2 = inlined_call_operand.hbm [shape: bf16[512,128], index: 2, kind: output, shape index: {0}]
  %s3 = inlined_call_operand.hbm [shape: f32[2,2,128], index: 3, kind: output, shape index: {1}]
  %4 = xla_tuple %s2, %s3
  %s5 = sld [smem:[#allocation0]]
  $region49: #{tpu_custom_call.1} parent=0
    _
  %s7 = ssub.s32 1, %s5
  %s8 = scalar_select 0, %s7, %s5
  $region1: #{tpu_custom_call.1} parent=0
    #allocation2 [shape = 'u8[131072]{0}', space=vmem, size = 0x20000, scoped, tag = 'output window, operand 0']
    #allocation3 [shape = 's32[2]{0}', space=sflag, size = 0x8, scoped, tag = 'scoped memory for tpu_custom_call.1']
    #allocation4 [shape = 'u8[2048]{0}', space=vmem, size = 0x800, scoped, tag = 'output window, operand 1']
    #allocation5 [shape = 's32[2]{0}', space=sflag, size = 0x8, scoped, tag = 'scoped memory for tpu_custom_call.1']
    %9 = vsyncpa [#allocation3], 0
    %s10 = scalar_lea.sflag [#allocation3], 1
    %11 = vsyncpa %s10, 0
    %12 = vsyncpa [#allocation5], 0
    %s13 = scalar_lea.sflag [#allocation5], 1
    %14 = vsyncpa %s13, 0
    loop: start=0, step=1, limit=4
    $region2: #{tpu_custom_call.1} parent=1 // loop_pre_header
      _
    $region3: #{tpu_custom_call.1} parent=1 // loop_header
      %s16 = sphi 0, %s20
      %p17 = scmp.ge.s32.totalorder %s16, 4
      %s26 = sphi 0, %s28
      %s29 = sphi 0, %s26
      %s30 = sphi 0, %s29
      %s46 = sphi 0, %s30
      %s50 = sphi 0, %s50
      %s52 = sphi 0, %s50
      %s53 = sphi 0, %s52
      %s67 = sphi 0, %s53
      %s73 = sphi 0, %s75
      %s76 = sphi 0, %s73
      %s77 = sphi 0, %s76
      %s93 = sphi 0, %s77
      %s99 = sphi 0, %s101
      %s102 = sphi 0, %s99
      %s103 = sphi 0, %s102
      %s119 = sphi 0, %s103
    $region4: #{tpu_custom_call.1} parent=1 // loop_header_branch
      %19 = sbr.rel (%p17) target = $region8
    $region5: #{tpu_custom_call.1} parent=1 // loop_body
      %s21 = ssub.s32 %s16, 1
      %s22 = ssub.s32 %s16, 2
      %s23 = sadd.s32 %s16, 1
      %s24 = ssub.s32 %s16, %s23
      %p25 = scmp.eq.s32.totalorder %s24, 0
      %s27 = sadd.s32 %s26, 1
      %s28 = scalar_select %p25, %s26, %s27
      %p31 = pneg %p25
      %p32 = scmp.eq.s32.totalorder %s16, 1
      %p33 = por %p31, %p32
      %p34 = scmp.ne.s32.totalorder %s26, %s29
      %p35 = scmp.eq.s32.totalorder %s16, 0
      %p36 = por %p34, %p35
      %p37 = scmp.ne.s32.totalorder %s26, %s29
      %p38 = scmp.eq.s32.totalorder %s21, 1
      %p39 = por %p37, %p38
      %p40 = scmp.ne.s32.totalorder %s29, %s30
      %p41 = scmp.eq.s32.totalorder %s21, 0
      %p42 = por %p40, %p41
      %p43 = scmp.ne.s32.totalorder %s29, %s30
      %p44 = scmp.eq.s32.totalorder %s22, 1
      %p45 = por %p43, %p44
      %p47 = scmp.ne.s32.totalorder %s30, %s46
      %p48 = scmp.eq.s32.totalorder %s22, 0
      %p49 = por %p47, %p48
      %s51 = sadd.s32 %s50, 1
      %p54 = scmp.eq.s32.totalorder %s16, 1
      %p55 = scmp.ne.s32.totalorder %s50, %s52
      %p56 = scmp.eq.s32.totalorder %s16, 0
      %p57 = por %p55, %p56
      %p58 = scmp.ne.s32.totalorder %s50, %s52
      %p59 = scmp.eq.s32.totalorder %s21, 1
      %p60 = por %p58, %p59
      %p61 = scmp.ne.s32.totalorder %s52, %s53
      %p62 = scmp.eq.s32.totalorder %s21, 0
      %p63 = por %p61, %p62
      %p64 = scmp.ne.s32.totalorder %s52, %s53
      %p65 = scmp.eq.s32.totalorder %s22, 1
      %p66 = por %p64, %p65
      %p68 = scmp.ne.s32.totalorder %s53, %s67
      %p69 = scmp.eq.s32.totalorder %s22, 0
      %p70 = por %p68, %p69
      %s71 = ssub.s32 %s16, %s23
      %p72 = scmp.eq.s32.totalorder %s71, 0
      %s74 = sadd.s32 %s73, 1
      %s75 = scalar_select %p72, %s73, %s74
      %p78 = pneg %p72
      %p79 = scmp.eq.s32.totalorder %s16, 1
      %p80 = por %p78, %p79
      %p81 = scmp.ne.s32.totalorder %s73, %s76
      %p82 = scmp.eq.s32.totalorder %s16, 0
      %p83 = por %p81, %p82
      %p84 = scmp.ne.s32.totalorder %s73, %s76
      %p85 = scmp.eq.s32.totalorder %s21, 1
      %p86 = por %p84, %p85
      %p87 = scmp.ne.s32.totalorder %s76, %s77
      %p88 = scmp.eq.s32.totalorder %s21, 0
      %p89 = por %p87, %p88
      %p90 = scmp.ne.s32.totalorder %s76, %s77
      %p91 = scmp.eq.s32.totalorder %s22, 1
      %p92 = por %p90, %p91
      %p94 = scmp.ne.s32.totalorder %s77, %s93
      %p95 = scmp.eq.s32.totalorder %s22, 0
      %p96 = por %p94, %p95
      %s97 = ssub.s32 %s16, %s23
      %p98 = scmp.eq.s32.totalorder %s97, 0
      %s100 = sadd.s32 %s99, 1
      %s101 = scalar_select %p98, %s99, %s100
      %p104 = pneg %p98
      %p105 = scmp.eq.s32.totalorder %s16, 1
      %p106 = por %p104, %p105
      %p107 = scmp.ne.s32.totalorder %s99, %s102
      %p108 = scmp.eq.s32.totalorder %s16, 0
      %p109 = por %p107, %p108
      %p110 = scmp.ne.s32.totalorder %s99, %s102
      %p111 = scmp.eq.s32.totalorder %s21, 1
      %p112 = por %p110, %p111
      %p113 = scmp.ne.s32.totalorder %s102, %s103
      %p114 = scmp.eq.s32.totalorder %s21, 0
      %p115 = por %p113, %p114
      %p116 = scmp.ne.s32.totalorder %s102, %s103
      %p117 = scmp.eq.s32.totalorder %s22, 1
      %p118 = por %p116, %p117
      %p120 = scmp.ne.s32.totalorder %s103, %s119
      %p121 = scmp.eq.s32.totalorder %s22, 0
      %p122 = por %p120, %p121
      %p123 = scmp.le.s32.totalorder 1, %s16
      %p124 = scmp.lt.s32.totalorder %s16, 3
      %p125 = pnand %p123, %p124
      %p126 = pneg %p125
      // Predicated region
      $region9: #{tpu_custom_call.1} parent=5 // pred_check
        _
      $region10: #{tpu_custom_call.1} parent=5 // pred_check_branch
        %128 = sbr.rel (%p125) target = $region12
      $region11: #{tpu_custom_call.1} parent=5 // pred_region
        %s129 = ssub.s32 %s16, 1
        // Predicated region
        $region13: #{tpu_custom_call.1} parent=11 // pred_check
          %p130 = pneg %p63
        $region14: #{tpu_custom_call.1} parent=11 // pred_check_branch
          %132 = sbr.rel (%p130) target = $region16
        $region15: #{tpu_custom_call.1} parent=11 // pred_region
          _
        $region16: #{tpu_custom_call.1} parent=11 // pred_fallthru
          _
      $region12: #{tpu_custom_call.1} parent=5 // pred_fallthru
        _
      %p133 = scmp.lt.s32.totalorder %s16, 2
      // Predicated region
      $region17: #{tpu_custom_call.1} parent=5 // pred_check
        %p134 = pneg %p133
      $region18: #{tpu_custom_call.1} parent=5 // pred_check_branch
        %136 = sbr.rel (%p134) target = $region20
      $region19: #{tpu_custom_call.1} parent=5 // pred_region
        // Predicated region
        $region21: #{tpu_custom_call.1} parent=19 // pred_check
          %p137 = pneg %p36
        $region22: #{tpu_custom_call.1} parent=19 // pred_check_branch
          %139 = sbr.rel (%p137) target = $region24
        $region23: #{tpu_custom_call.1} parent=19 // pred_region
          %p140 = scmp.lt.s32.totalorder %s16, 1
          %s141 = scalar_select %p140, %s16, 1
          %s142 = smul.addr %s141, 54
          %s143 = smul.addr %s142, 4
          %s144 = scalar_lea.vmem %s0, %s143
        $region24: #{tpu_custom_call.1} parent=19 // pred_fallthru
          _
      $region20: #{tpu_custom_call.1} parent=5 // pred_fallthru
        _
      %p145 = scmp.le.s32.totalorder 1, %s16
      %p146 = scmp.lt.s32.totalorder %s16, 3
      %p147 = pnand %p145, %p146
      %p148 = pneg %p147
      // Predicated region
      $region25: #{tpu_custom_call.1} parent=5 // pred_check
        _
      $region26: #{tpu_custom_call.1} parent=5 // pred_check_branch
        %150 = sbr.rel (%p147) target = $region28
      $region27: #{tpu_custom_call.1} parent=5 // pred_region
        %s151 = ssub.s32 %s16, 1
        %p152 = scmp.lt.s32.totalorder %s21, 1
        %s153 = scalar_select %p152, %s21, 1
        %s154 = smul.addr %s153, 54
        %s155 = smul.addr %s154, 4
        %s156 = scalar_lea.vmem %s0, %s155
        %p157 = pneg %p42
        %p158 = pneg %p39
        %p159 = pneg %p63
        %p160 = pneg %p60
        %p161 = pneg %p89
        %p162 = pneg %p86
        %s163 = sand.u32 %s76, 1
        %s164 = scalar_lea.sflag [#allocation3], %s163
        %s165 = sand.u32 %s76, 1
        %s166 = smul.addr %s165, 128
        %s167 = scalar_lea.vmem [#allocation2], %s166
        %p168 = pneg %p115
        %p169 = pneg %p112
        %s170 = sand.u32 %s102, 1
        %s171 = scalar_lea.sflag [#allocation5], %s170
        %s172 = sand.u32 %s102, 1
        %s173 = smul.addr %s172, 2
        %s174 = scalar_lea.vmem [#allocation4], %s173
        %p175 = scmp.lt.s32.totalorder %s21, 1
        %s176 = scalar_select %p175, %s21, 1
        %s177 = smul.addr %s176, 54
        %s178 = smul.addr %s177, 4
        %s179 = scalar_lea.vmem %s0, %s178
        %s180 = smul.u32 32, %s21
        %v182 = vld [vmem:[%s179] sm:$0xf]
        %v183 = vld [vmem:[%s179 + $0x4] sm:$0xf]
        %v184 = vld [vmem:[%s179 + $0x8] sm:$0x1]
        %v185 = vld [vmem:[%s179 + $0xc] sm:$0xf]
        %v186 = vld [vmem:[%s179 + $0x10] sm:$0xf]
        %v187 = vld [vmem:[%s179 + $0x14] sm:$0x1]
        %v188 = vld [vmem:[%s179 + $0x18] sm:$0xf]
        %v189 = vld [vmem:[%s179 + $0x1c] sm:$0xf]
        %v190 = vld [vmem:[%s179 + $0x20] sm:$0x1]
        %v191 = vld [vmem:[%s179 + $0x24] sm:$0xf]
        %v192 = vld [vmem:[%s179 + $0x28] sm:$0xf]
        %v193 = vld [vmem:[%s179 + $0x2c] sm:$0x1]
        %v194 = vld [vmem:[%s179 + $0x30] sm:$0xf]
        %v195 = vld [vmem:[%s179 + $0x34] sm:$0xf]
        %v196 = vld [vmem:[%s179 + $0x38] sm:$0x1]
        %v197 = vld [vmem:[%s179 + $0x3c] sm:$0xf]
        %v198 = vld [vmem:[%s179 + $0x40] sm:$0xf]
        %v199 = vld [vmem:[%s179 + $0x44] sm:$0x1]
        %v200 = vld [vmem:[%s179 + $0x48] sm:$0xf]
        %v201 = vld [vmem:[%s179 + $0x4c] sm:$0xf]
        %v202 = vld [vmem:[%s179 + $0x50] sm:$0x1]
        %v203 = vld [vmem:[%s179 + $0x54] sm:$0xf]
        %v204 = vld [vmem:[%s179 + $0x58] sm:$0xf]
        %v205 = vld [vmem:[%s179 + $0x5c] sm:$0x1]
        %v206 = vld [vmem:[%s179 + $0x60] sm:$0xf]
        %v207 = vld [vmem:[%s179 + $0x64] sm:$0xf]
        %v208 = vld [vmem:[%s179 + $0x68] sm:$0x1]
        %v209 = vld [vmem:[%s179 + $0x6c] sm:$0xf]
        %v210 = vld [vmem:[%s179 + $0x70] sm:$0xf]
        %v211 = vld [vmem:[%s179 + $0x74] sm:$0x1]
        %v212 = vld [vmem:[%s179 + $0x78] sm:$0xf]
        %v213 = vld [vmem:[%s179 + $0x7c] sm:$0xf]
        %v214 = vld [vmem:[%s179 + $0x80] sm:$0x1]
        %v215 = vld [vmem:[%s179 + $0x84] sm:$0xf]
        %v216 = vld [vmem:[%s179 + $0x88] sm:$0xf]
        %v217 = vld [vmem:[%s179 + $0x8c] sm:$0x1]
        %v218 = vld [vmem:[%s179 + $0x90] sm:$0xf]
        %v219 = vld [vmem:[%s179 + $0x94] sm:$0xf]
        %v220 = vld [vmem:[%s179 + $0x98] sm:$0x1]
        %v221 = vld [vmem:[%s179 + $0x9c] sm:$0xf]
        %v222 = vld [vmem:[%s179 + $0xa0] sm:$0xf]
        %v223 = vld [vmem:[%s179 + $0xa4] sm:$0x1]
        %v224 = vld [vmem:[%s179 + $0xa8] sm:$0xf]
        %v225 = vld [vmem:[%s179 + $0xac] sm:$0xf]
        %v226 = vld [vmem:[%s179 + $0xb0] sm:$0x1]
        %v227 = vld [vmem:[%s179 + $0xb4] sm:$0xf]
        %v228 = vld [vmem:[%s179 + $0xb8] sm:$0xf]
        %v229 = vld [vmem:[%s179 + $0xbc] sm:$0x1]
        %v230 = vld [vmem:[%s179 + $0xc0] sm:$0xf]
        %v231 = vld [vmem:[%s179 + $0xc4] sm:$0xf]
        %v232 = vld [vmem:[%s179 + $0xc8] sm:$0x1]
        %v233 = vld [vmem:[%s179 + $0xcc] sm:$0xf]
        %v234 = vld [vmem:[%s179 + $0xd0] sm:$0xf]
        %v235 = vld [vmem:[%s179 + $0xd4] sm:$0x1]
        %v236 = vld [vmem:[%s1] sm:$0x3]
        %vm237 = vsmask.f32 3328
        %vm238 = vsmask.f32 7440
        %vm239 = vmor %vm237, %vm238
        %v241 = vshrl.u32 %v182, 16
        %v243 = vrot.slane %v241, 4
        %v244 = vshll.u32 %v182, 16
        %v246 = vrot.slane %v244, 5
        %v247 = vor.u32 %v243, %v246
        %v248 = vrot.slane %v247, 4
        %v250 = vshll.u32 %v183, 16
        %v252 = vrot.slane %v250, 5
        %v253 = vsel %vm239, %v248, %v252
        %v254 = vshrl.u32 %v183, 16
        %v256 = vrot.slane %v254, 4
        %v257 = vor.u32 %v256, %v252
        %v258 = vrot.slane %v257, 4
        %v260 = vshll.u32 %v184, 16
        %v262 = vrot.slane %v260, 5
        %v263 = vsel %vm239, %v258, %v262
        %v265 = vshrl.u32 %v185, 16
        %v267 = vrot.slane %v265, 4
        %v268 = vshll.u32 %v185, 16
        %v270 = vrot.slane %v268, 5
        %v271 = vor.u32 %v267, %v270
        %v272 = vrot.slane %v271, 4
        %v274 = vshll.u32 %v186, 16
        %v276 = vrot.slane %v274, 5
        %v277 = vsel %vm239, %v272, %v276
        %v278 = vshrl.u32 %v186, 16
        %v280 = vrot.slane %v278, 4
        %v281 = vor.u32 %v280, %v276
        %v282 = vrot.slane %v281, 4
        %v284 = vshll.u32 %v187, 16
        %v286 = vrot.slane %v284, 5
        %v287 = vsel %vm239, %v282, %v286
        %v289 = vshrl.u32 %v188, 16
        %v291 = vrot.slane %v289, 4
        %v292 = vshll.u32 %v188, 16
        %v294 = vrot.slane %v292, 5
        %v295 = vor.u32 %v291, %v294
        %v296 = vrot.slane %v295, 4
        %v298 = vshll.u32 %v189, 16
        %v300 = vrot.slane %v298, 5
        %v301 = vsel %vm239, %v296, %v300
        %v302 = vshrl.u32 %v189, 16
        %v304 = vrot.slane %v302, 4
        %v305 = vor.u32 %v304, %v300
        %v306 = vrot.slane %v305, 4
        %v308 = vshll.u32 %v190, 16
        %v310 = vrot.slane %v308, 5
        %v311 = vsel %vm239, %v306, %v310
        %v313 = vshrl.u32 %v191, 16
        %v315 = vrot.slane %v313, 4
        %v316 = vshll.u32 %v191, 16
        %v318 = vrot.slane %v316, 5
        %v319 = vor.u32 %v315, %v318
        %v320 = vrot.slane %v319, 4
        %v322 = vshll.u32 %v192, 16
        %v324 = vrot.slane %v322, 5
        %v325 = vsel %vm239, %v320, %v324
        %v326 = vshrl.u32 %v192, 16
        %v328 = vrot.slane %v326, 4
        %v329 = vor.u32 %v328, %v324
        %v330 = vrot.slane %v329, 4
        %v332 = vshll.u32 %v193, 16
        %v334 = vrot.slane %v332, 5
        %v335 = vsel %vm239, %v330, %v334
        %v337 = vshrl.u32 %v194, 16
        %v339 = vrot.slane %v337, 4
        %v340 = vshll.u32 %v194, 16
        %v342 = vrot.slane %v340, 5
        %v343 = vor.u32 %v339, %v342
        %v344 = vrot.slane %v343, 4
        %v346 = vshll.u32 %v195, 16
        %v348 = vrot.slane %v346, 5
        %v349 = vsel %vm239, %v344, %v348
        %v350 = vshrl.u32 %v195, 16
        %v352 = vrot.slane %v350, 4
        %v353 = vor.u32 %v352, %v348
        %v354 = vrot.slane %v353, 4
        %v356 = vshll.u32 %v196, 16
        %v358 = vrot.slane %v356, 5
        %v359 = vsel %vm239, %v354, %v358
        %v361 = vshrl.u32 %v197, 16
        %v363 = vrot.slane %v361, 4
        %v364 = vshll.u32 %v197, 16
        %v366 = vrot.slane %v364, 5
        %v367 = vor.u32 %v363, %v366
        %v368 = vrot.slane %v367, 4
        %v370 = vshll.u32 %v198, 16
        %v372 = vrot.slane %v370, 5
        %v373 = vsel %vm239, %v368, %v372
        %v374 = vshrl.u32 %v198, 16
        %v376 = vrot.slane %v374, 4
        %v377 = vor.u32 %v376, %v372
        %v378 = vrot.slane %v377, 4
        %v380 = vshll.u32 %v199, 16
        %v382 = vrot.slane %v380, 5
        %v383 = vsel %vm239, %v378, %v382
        %v385 = vshrl.u32 %v200, 16
        %v387 = vrot.slane %v385, 4
        %v388 = vshll.u32 %v200, 16
        %v390 = vrot.slane %v388, 5
        %v391 = vor.u32 %v387, %v390
        %v392 = vrot.slane %v391, 4
        %v394 = vshll.u32 %v201, 16
        %v396 = vrot.slane %v394, 5
        %v397 = vsel %vm239, %v392, %v396
        %v398 = vshrl.u32 %v201, 16
        %v400 = vrot.slane %v398, 4
        %v401 = vor.u32 %v400, %v396
        %v402 = vrot.slane %v401, 4
        %v404 = vshll.u32 %v202, 16
        %v406 = vrot.slane %v404, 5
        %v407 = vsel %vm239, %v402, %v406
        %v409 = vshrl.u32 %v203, 16
        %v411 = vrot.slane %v409, 4
        %v412 = vshll.u32 %v203, 16
        %v414 = vrot.slane %v412, 5
        %v415 = vor.u32 %v411, %v414
        %v416 = vrot.slane %v415, 4
        %v418 = vshll.u32 %v204, 16
        %v420 = vrot.slane %v418, 5
        %v421 = vsel %vm239, %v416, %v420
        %v422 = vshrl.u32 %v204, 16
        %v424 = vrot.slane %v422, 4
        %v425 = vor.u32 %v424, %v420
        %v426 = vrot.slane %v425, 4
        %v428 = vshll.u32 %v205, 16
        %v430 = vrot.slane %v428, 5
        %v431 = vsel %vm239, %v426, %v430
        %v433 = vshrl.u32 %v206, 16
        %v435 = vrot.slane %v433, 4
        %v436 = vshll.u32 %v206, 16
        %v438 = vrot.slane %v436, 5
        %v439 = vor.u32 %v435, %v438
        %v440 = vrot.slane %v439, 4
        %v442 = vshll.u32 %v207, 16
        %v444 = vrot.slane %v442, 5
        %v445 = vsel %vm239, %v440, %v444
        %v446 = vshrl.u32 %v207, 16
        %v448 = vrot.slane %v446, 4
        %v449 = vor.u32 %v448, %v444
        %v450 = vrot.slane %v449, 4
        %v452 = vshll.u32 %v208, 16
        %v454 = vrot.slane %v452, 5
        %v455 = vsel %vm239, %v450, %v454
        %v457 = vshrl.u32 %v209, 16
        %v459 = vrot.slane %v457, 4
        %v460 = vshll.u32 %v209, 16
        %v462 = vrot.slane %v460, 5
        %v463 = vor.u32 %v459, %v462
        %v464 = vrot.slane %v463, 4
        %v466 = vshll.u32 %v210, 16
        %v468 = vrot.slane %v466, 5
        %v469 = vsel %vm239, %v464, %v468
        %v470 = vshrl.u32 %v210, 16
        %v472 = vrot.slane %v470, 4
        %v473 = vor.u32 %v472, %v468
        %v474 = vrot.slane %v473, 4
        %v476 = vshll.u32 %v211, 16
        %v478 = vrot.slane %v476, 5
        %v479 = vsel %vm239, %v474, %v478
        %v481 = vshrl.u32 %v212, 16
        %v483 = vrot.slane %v481, 4
        %v484 = vshll.u32 %v212, 16
        %v486 = vrot.slane %v484, 5
        %v487 = vor.u32 %v483, %v486
        %v488 = vrot.slane %v487, 4
        %v490 = vshll.u32 %v213, 16
        %v492 = vrot.slane %v490, 5
        %v493 = vsel %vm239, %v488, %v492
        %v494 = vshrl.u32 %v213, 16
        %v496 = vrot.slane %v494, 4
        %v497 = vor.u32 %v496, %v492
        %v498 = vrot.slane %v497, 4
        %v500 = vshll.u32 %v214, 16
        %v502 = vrot.slane %v500, 5
        %v503 = vsel %vm239, %v498, %v502
        %v505 = vshrl.u32 %v215, 16
        %v507 = vrot.slane %v505, 4
        %v508 = vshll.u32 %v215, 16
        %v510 = vrot.slane %v508, 5
        %v511 = vor.u32 %v507, %v510
        %v512 = vrot.slane %v511, 4
        %v514 = vshll.u32 %v216, 16
        %v516 = vrot.slane %v514, 5
        %v517 = vsel %vm239, %v512, %v516
        %v518 = vshrl.u32 %v216, 16
        %v520 = vrot.slane %v518, 4
        %v521 = vor.u32 %v520, %v516
        %v522 = vrot.slane %v521, 4
        %v524 = vshll.u32 %v217, 16
        %v526 = vrot.slane %v524, 5
        %v527 = vsel %vm239, %v522, %v526
        %v529 = vshrl.u32 %v218, 16
        %v531 = vrot.slane %v529, 4
        %v532 = vshll.u32 %v218, 16
        %v534 = vrot.slane %v532, 5
        %v535 = vor.u32 %v531, %v534
        %v536 = vrot.slane %v535, 4
        %v538 = vshll.u32 %v219, 16
        %v540 = vrot.slane %v538, 5
        %v541 = vsel %vm239, %v536, %v540
        %v542 = vshrl.u32 %v219, 16
        %v544 = vrot.slane %v542, 4
        %v545 = vor.u32 %v544, %v540
        %v546 = vrot.slane %v545, 4
        %v548 = vshll.u32 %v220, 16
        %v550 = vrot.slane %v548, 5
        %v551 = vsel %vm239, %v546, %v550
        %v553 = vshrl.u32 %v221, 16
        %v555 = vrot.slane %v553, 4
        %v556 = vshll.u32 %v221, 16
        %v558 = vrot.slane %v556, 5
        %v559 = vor.u32 %v555, %v558
        %v560 = vrot.slane %v559, 4
        %v562 = vshll.u32 %v222, 16
        %v564 = vrot.slane %v562, 5
        %v565 = vsel %vm239, %v560, %v564
        %v566 = vshrl.u32 %v222, 16
        %v568 = vrot.slane %v566, 4
        %v569 = vor.u32 %v568, %v564
        %v570 = vrot.slane %v569, 4
        %v572 = vshll.u32 %v223, 16
        %v574 = vrot.slane %v572, 5
        %v575 = vsel %vm239, %v570, %v574
        %v577 = vshrl.u32 %v224, 16
        %v579 = vrot.slane %v577, 4
        %v580 = vshll.u32 %v224, 16
        %v582 = vrot.slane %v580, 5
        %v583 = vor.u32 %v579, %v582
        %v584 = vrot.slane %v583, 4
        %v586 = vshll.u32 %v225, 16
        %v588 = vrot.slane %v586, 5
        %v589 = vsel %vm239, %v584, %v588
        %v590 = vshrl.u32 %v225, 16
        %v592 = vrot.slane %v590, 4
        %v593 = vor.u32 %v592, %v588
        %v594 = vrot.slane %v593, 4
        %v596 = vshll.u32 %v226, 16
        %v598 = vrot.slane %v596, 5
        %v599 = vsel %vm239, %v594, %v598
        %v601 = vshrl.u32 %v227, 16
        %v603 = vrot.slane %v601, 4
        %v604 = vshll.u32 %v227, 16
        %v606 = vrot.slane %v604, 5
        %v607 = vor.u32 %v603, %v606
        %v608 = vrot.slane %v607, 4
        %v610 = vshll.u32 %v228, 16
        %v612 = vrot.slane %v610, 5
        %v613 = vsel %vm239, %v608, %v612
        %v614 = vshrl.u32 %v228, 16
        %v616 = vrot.slane %v614, 4
        %v617 = vor.u32 %v616, %v612
        %v618 = vrot.slane %v617, 4
        %v620 = vshll.u32 %v229, 16
        %v622 = vrot.slane %v620, 5
        %v623 = vsel %vm239, %v618, %v622
        %s624 = scalar_lea.vmem %s1, 2
        %v625 = vld [vmem:[%s624] sm:$0x3]
        %v626 = vunpack.c.l.b16 %v253
        %v627 = vunpack.c.l.b16 %v263
        %v628 = vunpack.c.l.b16 %v277
        %v629 = vunpack.c.l.b16 %v287
        %v630 = vunpack.c.l.b16 %v301
        %v631 = vunpack.c.l.b16 %v311
        %v632 = vunpack.c.l.b16 %v325
        %v633 = vunpack.c.l.b16 %v335
        %v634 = vunpack.c.l.b16 %v349
        %v635 = vunpack.c.l.b16 %v359
        %v636 = vunpack.c.l.b16 %v373
        %v637 = vunpack.c.l.b16 %v383
        %v638 = vunpack.c.l.b16 %v397
        %v639 = vunpack.c.l.b16 %v407
        %v640 = vunpack.c.l.b16 %v421
        %v641 = vunpack.c.l.b16 %v431
        %v642 = vunpack.c.l.b16 %v445
        %v643 = vunpack.c.l.b16 %v455
        %v644 = vunpack.c.l.b16 %v469
        %v645 = vunpack.c.l.b16 %v479
        %v646 = vunpack.c.l.b16 %v493
        %v647 = vunpack.c.l.b16 %v503
        %v648 = vunpack.c.l.b16 %v517
        %v649 = vunpack.c.l.b16 %v527
        %v650 = vunpack.c.l.b16 %v541
        %v651 = vunpack.c.l.b16 %v551
        %v652 = vunpack.c.l.b16 %v565
        %v653 = vunpack.c.l.b16 %v575
        %v654 = vunpack.c.l.b16 %v589
        %v655 = vunpack.c.l.b16 %v599
        %v656 = vunpack.c.l.b16 %v613
        %v657 = vunpack.c.l.b16 %v623
        %v658 = vpack.c.b16 %v627, %v626
        %v659 = vpack.c.b16 %v629, %v628
        %v660 = vpack.c.b16 %v631, %v630
        %v661 = vpack.c.b16 %v633, %v632
        %v662 = vpack.c.b16 %v635, %v634
        %v663 = vpack.c.b16 %v637, %v636
        %v664 = vpack.c.b16 %v639, %v638
        %v665 = vpack.c.b16 %v641, %v640
        %v666 = vpack.c.b16 %v643, %v642
        %v667 = vpack.c.b16 %v645, %v644
        %v668 = vpack.c.b16 %v647, %v646
        %v669 = vpack.c.b16 %v649, %v648
        %v670 = vpack.c.b16 %v651, %v650
        %v671 = vpack.c.b16 %v653, %v652
        %v672 = vpack.c.b16 %v655, %v654
        %v673 = vpack.c.b16 %v657, %v656
        %vm674 = vcmask 31744
        %v676 = vsel %vm674, %v658, 0
        %v679 = vsel %vm674, %v659, 0
        %v682 = vsel %vm674, %v660, 0
        %v685 = vsel %vm674, %v661, 0
        %v688 = vsel %vm674, %v662, 0
        %v691 = vsel %vm674, %v663, 0
        %v694 = vsel %vm674, %v664, 0
        %v697 = vsel %vm674, %v665, 0
        %v700 = vsel %vm674, %v666, 0
        %v703 = vsel %vm674, %v667, 0
        %v706 = vsel %vm674, %v668, 0
        %v709 = vsel %vm674, %v669, 0
        %v712 = vsel %vm674, %v670, 0
        %v715 = vsel %vm674, %v671, 0
        %v718 = vsel %vm674, %v672, 0
        %v721 = vsel %vm674, %v673, 0
        %vm723 = vcmask 1041408
        %v725 = vsel %vm723, %v625, 0
        %727 = vmatpush.bf16.msra.mxu0 0
        %728 = vmatpush.bf16.msra.mxu0 0
        %729 = vmatpush.bf16.msra.mxu0 0
        %730 = vmatpush.bf16.msra.mxu0 0
        %731 = vmatpush.bf16.msra.mxu0 0
        %732 = vmatpush.bf16.msra.mxu0 0
        %733 = vmatpush.bf16.msra.mxu0 0
        %734 = vmatpush.bf16.msra.mxu0 %v725
        %735 = vmatmul.bf16.gmra.mxu0 %v676
        %v736 = vpop.f32.mrf.mxu0
        %v737 = vadd.f32 0.0, %v736
        %v738 = vpop.f32.mrf.mxu0
        %v739 = vadd.f32 0.0, %v738
        %740 = vmatmul.bf16.gmra.mxu0 %v679
        %v741 = vpop.f32.mrf.mxu0
        %v742 = vadd.f32 0.0, %v741
        %v743 = vpop.f32.mrf.mxu0
        %v744 = vadd.f32 0.0, %v743
        %745 = vmatmul.bf16.gmra.mxu0 %v682
        %v746 = vpop.f32.mrf.mxu0
        %v747 = vadd.f32 0.0, %v746
        %v748 = vpop.f32.mrf.mxu0
        %v749 = vadd.f32 0.0, %v748
        %750 = vmatmul.bf16.gmra.mxu0 %v685
        %v751 = vpop.f32.mrf.mxu0
        %v752 = vadd.f32 0.0, %v751
        %v753 = vpop.f32.mrf.mxu0
        %v754 = vadd.f32 0.0, %v753
        %755 = vmatmul.bf16.gmra.mxu0 %v688
        %v756 = vpop.f32.mrf.mxu0
        %v757 = vadd.f32 0.0, %v756
        %v758 = vpop.f32.mrf.mxu0
        %v759 = vadd.f32 0.0, %v758
        %760 = vmatmul.bf16.gmra.mxu0 %v691
        %v761 = vpop.f32.mrf.mxu0
        %v762 = vadd.f32 0.0, %v761
        %v763 = vpop.f32.mrf.mxu0
        %v764 = vadd.f32 0.0, %v763
        %765 = vmatmul.bf16.gmra.mxu0 %v694
        %v766 = vpop.f32.mrf.mxu0
        %v767 = vadd.f32 0.0, %v766
        %v768 = vpop.f32.mrf.mxu0
        %v769 = vadd.f32 0.0, %v768
        %770 = vmatmul.bf16.gmra.mxu0 %v697
        %v771 = vpop.f32.mrf.mxu0
        %v772 = vadd.f32 0.0, %v771
        %v773 = vpop.f32.mrf.mxu0
        %v774 = vadd.f32 0.0, %v773
        %775 = vmatmul.bf16.gmra.mxu0 %v700
        %v776 = vpop.f32.mrf.mxu0
        %v777 = vadd.f32 0.0, %v776
        %v778 = vpop.f32.mrf.mxu0
        %v779 = vadd.f32 0.0, %v778
        %780 = vmatmul.bf16.gmra.mxu0 %v703
        %v781 = vpop.f32.mrf.mxu0
        %v782 = vadd.f32 0.0, %v781
        %v783 = vpop.f32.mrf.mxu0
        %v784 = vadd.f32 0.0, %v783
        %785 = vmatmul.bf16.gmra.mxu0 %v706
        %v786 = vpop.f32.mrf.mxu0
        %v787 = vadd.f32 0.0, %v786
        %v788 = vpop.f32.mrf.mxu0
        %v789 = vadd.f32 0.0, %v788
        %790 = vmatmul.bf16.gmra.mxu0 %v709
        %v791 = vpop.f32.mrf.mxu0
        %v792 = vadd.f32 0.0, %v791
        %v793 = vpop.f32.mrf.mxu0
        %v794 = vadd.f32 0.0, %v793
        %795 = vmatmul.bf16.gmra.mxu0 %v712
        %v796 = vpop.f32.mrf.mxu0
        %v797 = vadd.f32 0.0, %v796
        %v798 = vpop.f32.mrf.mxu0
        %v799 = vadd.f32 0.0, %v798
        %800 = vmatmul.bf16.gmra.mxu0 %v715
        %v801 = vpop.f32.mrf.mxu0
        %v802 = vadd.f32 0.0, %v801
        %v803 = vpop.f32.mrf.mxu0
        %v804 = vadd.f32 0.0, %v803
        %805 = vmatmul.bf16.gmra.mxu0 %v718
        %v806 = vpop.f32.mrf.mxu0
        %v807 = vadd.f32 0.0, %v806
        %v808 = vpop.f32.mrf.mxu0
        %v809 = vadd.f32 0.0, %v808
        %810 = vmatmul.bf16.gmra.mxu0 %v721
        %v811 = vpop.f32.mrf.mxu0
        %v812 = vadd.f32 0.0, %v811
        %v813 = vpop.f32.mrf.mxu0
        %v814 = vadd.f32 0.0, %v813
        %815 = vdwg.mxu0
        %v848 = vunpack.c.l.b16 %v182
        %v849 = vunpack.c.l.b16 %v183
        %v850 = vunpack.c.l.b16 %v185
        %v851 = vunpack.c.l.b16 %v186
        %v852 = vunpack.c.l.b16 %v188
        %v853 = vunpack.c.l.b16 %v189
        %v854 = vunpack.c.l.b16 %v191
        %v855 = vunpack.c.l.b16 %v192
        %v856 = vunpack.c.l.b16 %v194
        %v857 = vunpack.c.l.b16 %v195
        %v858 = vunpack.c.l.b16 %v197
        %v859 = vunpack.c.l.b16 %v198
        %v860 = vunpack.c.l.b16 %v200
        %v861 = vunpack.c.l.b16 %v201
        %v862 = vunpack.c.l.b16 %v203
        %v863 = vunpack.c.l.b16 %v204
        %v864 = vunpack.c.l.b16 %v206
        %v865 = vunpack.c.l.b16 %v207
        %v866 = vunpack.c.l.b16 %v209
        %v867 = vunpack.c.l.b16 %v210
        %v868 = vunpack.c.l.b16 %v212
        %v869 = vunpack.c.l.b16 %v213
        %v870 = vunpack.c.l.b16 %v215
        %v871 = vunpack.c.l.b16 %v216
        %v872 = vunpack.c.l.b16 %v218
        %v873 = vunpack.c.l.b16 %v219
        %v874 = vunpack.c.l.b16 %v221
        %v875 = vunpack.c.l.b16 %v222
        %v876 = vunpack.c.l.b16 %v224
        %v877 = vunpack.c.l.b16 %v225
        %v878 = vunpack.c.l.b16 %v227
        %v879 = vunpack.c.l.b16 %v228
        %v880 = vpack.c.b16 %v849, %v848
        %v881 = vpack.c.b16 %v851, %v850
        %v882 = vpack.c.b16 %v853, %v852
        %v883 = vpack.c.b16 %v855, %v854
        %v884 = vpack.c.b16 %v857, %v856
        %v885 = vpack.c.b16 %v859, %v858
        %v886 = vpack.c.b16 %v861, %v860
        %v887 = vpack.c.b16 %v863, %v862
        %v888 = vpack.c.b16 %v865, %v864
        %v889 = vpack.c.b16 %v867, %v866
        %v890 = vpack.c.b16 %v869, %v868
        %v891 = vpack.c.b16 %v871, %v870
        %v892 = vpack.c.b16 %v873, %v872
        %v893 = vpack.c.b16 %v875, %v874
        %v894 = vpack.c.b16 %v877, %v876
        %v895 = vpack.c.b16 %v879, %v878
        %v897 = vsel %vm674, %v880, 0
        %v900 = vsel %vm674, %v881, 0
        %v903 = vsel %vm674, %v882, 0
        %v906 = vsel %vm674, %v883, 0
        %v909 = vsel %vm674, %v884, 0
        %v912 = vsel %vm674, %v885, 0
        %v915 = vsel %vm674, %v886, 0
        %v918 = vsel %vm674, %v887, 0
        %v921 = vsel %vm674, %v888, 0
        %v924 = vsel %vm674, %v889, 0
        %v927 = vsel %vm674, %v890, 0
        %v930 = vsel %vm674, %v891, 0
        %v933 = vsel %vm674, %v892, 0
        %v936 = vsel %vm674, %v893, 0
        %v939 = vsel %vm674, %v894, 0
        %v942 = vsel %vm674, %v895, 0
        %v945 = vsel %vm723, %v236, 0
        %947 = vmatpush.bf16.msra.mxu0 0
        %948 = vmatpush.bf16.msra.mxu0 0
        %949 = vmatpush.bf16.msra.mxu0 0
        %950 = vmatpush.bf16.msra.mxu0 0
        %951 = vmatpush.bf16.msra.mxu0 0
        %952 = vmatpush.bf16.msra.mxu0 0
        %953 = vmatpush.bf16.msra.mxu0 0
        %954 = vmatpush.bf16.msra.mxu0 %v945
        %955 = vmatmul.bf16.gmra.mxu0 %v897
        %v956 = vpop.f32.mrf.mxu0
        %v957 = vadd.f32 %v737, %v956
        %v958 = vpop.f32.mrf.mxu0
        %v959 = vadd.f32 %v739, %v958
        %960 = vmatmul.bf16.gmra.mxu0 %v900
        %v961 = vpop.f32.mrf.mxu0
        %v962 = vadd.f32 %v742, %v961
        %v963 = vpop.f32.mrf.mxu0
        %v964 = vadd.f32 %v744, %v963
        %965 = vmatmul.bf16.gmra.mxu0 %v903
        %v966 = vpop.f32.mrf.mxu0
        %v967 = vadd.f32 %v747, %v966
        %v968 = vpop.f32.mrf.mxu0
        %v969 = vadd.f32 %v749, %v968
        %970 = vmatmul.bf16.gmra.mxu0 %v906
        %v971 = vpop.f32.mrf.mxu0
        %v972 = vadd.f32 %v752, %v971
        %v973 = vpop.f32.mrf.mxu0
        %v974 = vadd.f32 %v754, %v973
        %975 = vmatmul.bf16.gmra.mxu0 %v909
        %v976 = vpop.f32.mrf.mxu0
        %v977 = vadd.f32 %v757, %v976
        %v978 = vpop.f32.mrf.mxu0
        %v979 = vadd.f32 %v759, %v978
        %980 = vmatmul.bf16.gmra.mxu0 %v912
        %v981 = vpop.f32.mrf.mxu0
        %v982 = vadd.f32 %v762, %v981
        %v983 = vpop.f32.mrf.mxu0
        %v984 = vadd.f32 %v764, %v983
        %985 = vmatmul.bf16.gmra.mxu0 %v915
        %v986 = vpop.f32.mrf.mxu0
        %v987 = vadd.f32 %v767, %v986
        %v988 = vpop.f32.mrf.mxu0
        %v989 = vadd.f32 %v769, %v988
        %990 = vmatmul.bf16.gmra.mxu0 %v918
        %v991 = vpop.f32.mrf.mxu0
        %v992 = vadd.f32 %v772, %v991
        %v993 = vpop.f32.mrf.mxu0
        %v994 = vadd.f32 %v774, %v993
        %995 = vmatmul.bf16.gmra.mxu0 %v921
        %v996 = vpop.f32.mrf.mxu0
        %v997 = vadd.f32 %v777, %v996
        %v998 = vpop.f32.mrf.mxu0
        %v999 = vadd.f32 %v779, %v998
        %1000 = vmatmul.bf16.gmra.mxu0 %v924
        %v1001 = vpop.f32.mrf.mxu0
        %v1002 = vadd.f32 %v782, %v1001
        %v1003 = vpop.f32.mrf.mxu0
        %v1004 = vadd.f32 %v784, %v1003
        %1005 = vmatmul.bf16.gmra.mxu0 %v927
        %v1006 = vpop.f32.mrf.mxu0
        %v1007 = vadd.f32 %v787, %v1006
        %v1008 = vpop.f32.mrf.mxu0
        %v1009 = vadd.f32 %v789, %v1008
        %1010 = vmatmul.bf16.gmra.mxu0 %v930
        %v1011 = vpop.f32.mrf.mxu0
        %v1012 = vadd.f32 %v792, %v1011
        %v1013 = vpop.f32.mrf.mxu0
        %v1014 = vadd.f32 %v794, %v1013
        %1015 = vmatmul.bf16.gmra.mxu0 %v933
        %v1016 = vpop.f32.mrf.mxu0
        %v1017 = vadd.f32 %v797, %v1016
        %v1018 = vpop.f32.mrf.mxu0
        %v1019 = vadd.f32 %v799, %v1018
        %1020 = vmatmul.bf16.gmra.mxu0 %v936
        %v1021 = vpop.f32.mrf.mxu0
        %v1022 = vadd.f32 %v802, %v1021
        %v1023 = vpop.f32.mrf.mxu0
        %v1024 = vadd.f32 %v804, %v1023
        %1025 = vmatmul.bf16.gmra.mxu0 %v939
        %v1026 = vpop.f32.mrf.mxu0
        %v1027 = vadd.f32 %v807, %v1026
        %v1028 = vpop.f32.mrf.mxu0
        %v1029 = vadd.f32 %v809, %v1028
        %1030 = vmatmul.bf16.gmra.mxu0 %v942
        %v1031 = vpop.f32.mrf.mxu0
        %v1032 = vadd.f32 %v812, %v1031
        %v1033 = vpop.f32.mrf.mxu0
        %v1034 = vadd.f32 %v814, %v1033
        %1035 = vdwg.mxu0
        %vm1052 = vcmask 1042432
        %vm1053 = vcmask 1046532
        %vm1054 = vmor %vm1052, %vm1053
        %v1055 = vrot.slane %v182, 5
        %v1056 = vrot.slane %v1055, 4
        %v1057 = vrot.slane %v183, 5
        %v1058 = vsel %vm1054, %v1056, %v1057
        %v1059 = vrot.slane %v1057, 4
        %v1060 = vrot.slane %v184, 5
        %v1061 = vsel %vm1054, %v1059, %v1060
        %v1062 = vrot.slane %v185, 5
        %v1063 = vrot.slane %v1062, 4
        %v1064 = vrot.slane %v186, 5
        %v1065 = vsel %vm1054, %v1063, %v1064
        %v1066 = vrot.slane %v1064, 4
        %v1067 = vrot.slane %v187, 5
        %v1068 = vsel %vm1054, %v1066, %v1067
        %v1069 = vrot.slane %v188, 5
        %v1070 = vrot.slane %v1069, 4
        %v1071 = vrot.slane %v189, 5
        %v1072 = vsel %vm1054, %v1070, %v1071
        %v1073 = vrot.slane %v1071, 4
        %v1074 = vrot.slane %v190, 5
        %v1075 = vsel %vm1054, %v1073, %v1074
        %v1076 = vrot.slane %v191, 5
        %v1077 = vrot.slane %v1076, 4
        %v1078 = vrot.slane %v192, 5
        %v1079 = vsel %vm1054, %v1077, %v1078
        %v1080 = vrot.slane %v1078, 4
        %v1081 = vrot.slane %v193, 5
        %v1082 = vsel %vm1054, %v1080, %v1081
        %v1083 = vrot.slane %v194, 5
        %v1084 = vrot.slane %v1083, 4
        %v1085 = vrot.slane %v195, 5
        %v1086 = vsel %vm1054, %v1084, %v1085
        %v1087 = vrot.slane %v1085, 4
        %v1088 = vrot.slane %v196, 5
        %v1089 = vsel %vm1054, %v1087, %v1088
        %v1090 = vrot.slane %v197, 5
        %v1091 = vrot.slane %v1090, 4
        %v1092 = vrot.slane %v198, 5
        %v1093 = vsel %vm1054, %v1091, %v1092
        %v1094 = vrot.slane %v1092, 4
        %v1095 = vrot.slane %v199, 5
        %v1096 = vsel %vm1054, %v1094, %v1095
        %v1097 = vrot.slane %v200, 5
        %v1098 = vrot.slane %v1097, 4
        %v1099 = vrot.slane %v201, 5
        %v1100 = vsel %vm1054, %v1098, %v1099
        %v1101 = vrot.slane %v1099, 4
        %v1102 = vrot.slane %v202, 5
        %v1103 = vsel %vm1054, %v1101, %v1102
        %v1104 = vrot.slane %v203, 5
        %v1105 = vrot.slane %v1104, 4
        %v1106 = vrot.slane %v204, 5
        %v1107 = vsel %vm1054, %v1105, %v1106
        %v1108 = vrot.slane %v1106, 4
        %v1109 = vrot.slane %v205, 5
        %v1110 = vsel %vm1054, %v1108, %v1109
        %v1111 = vrot.slane %v206, 5
        %v1112 = vrot.slane %v1111, 4
        %v1113 = vrot.slane %v207, 5
        %v1114 = vsel %vm1054, %v1112, %v1113
        %v1115 = vrot.slane %v1113, 4
        %v1116 = vrot.slane %v208, 5
        %v1117 = vsel %vm1054, %v1115, %v1116
        %v1118 = vrot.slane %v209, 5
        %v1119 = vrot.slane %v1118, 4
        %v1120 = vrot.slane %v210, 5
        %v1121 = vsel %vm1054, %v1119, %v1120
        %v1122 = vrot.slane %v1120, 4
        %v1123 = vrot.slane %v211, 5
        %v1124 = vsel %vm1054, %v1122, %v1123
        %v1125 = vrot.slane %v212, 5
        %v1126 = vrot.slane %v1125, 4
        %v1127 = vrot.slane %v213, 5
        %v1128 = vsel %vm1054, %v1126, %v1127
        %v1129 = vrot.slane %v1127, 4
        %v1130 = vrot.slane %v214, 5
        %v1131 = vsel %vm1054, %v1129, %v1130
        %v1132 = vrot.slane %v215, 5
        %v1133 = vrot.slane %v1132, 4
        %v1134 = vrot.slane %v216, 5
        %v1135 = vsel %vm1054, %v1133, %v1134
        %v1136 = vrot.slane %v1134, 4
        %v1137 = vrot.slane %v217, 5
        %v1138 = vsel %vm1054, %v1136, %v1137
        %v1139 = vrot.slane %v218, 5
        %v1140 = vrot.slane %v1139, 4
        %v1141 = vrot.slane %v219, 5
        %v1142 = vsel %vm1054, %v1140, %v1141
        %v1143 = vrot.slane %v1141, 4
        %v1144 = vrot.slane %v220, 5
        %v1145 = vsel %vm1054, %v1143, %v1144
        %v1146 = vrot.slane %v221, 5
        %v1147 = vrot.slane %v1146, 4
        %v1148 = vrot.slane %v222, 5
        %v1149 = vsel %vm1054, %v1147, %v1148
        %v1150 = vrot.slane %v1148, 4
        %v1151 = vrot.slane %v223, 5
        %v1152 = vsel %vm1054, %v1150, %v1151
        %v1153 = vrot.slane %v224, 5
        %v1154 = vrot.slane %v1153, 4
        %v1155 = vrot.slane %v225, 5
        %v1156 = vsel %vm1054, %v1154, %v1155
        %v1157 = vrot.slane %v1155, 4
        %v1158 = vrot.slane %v226, 5
        %v1159 = vsel %vm1054, %v1157, %v1158
        %v1160 = vrot.slane %v227, 5
        %v1161 = vrot.slane %v1160, 4
        %v1162 = vrot.slane %v228, 5
        %v1163 = vsel %vm1054, %v1161, %v1162
        %v1164 = vrot.slane %v1162, 4
        %v1165 = vrot.slane %v229, 5
        %v1166 = vsel %vm1054, %v1164, %v1165
        %s1167 = scalar_lea.vmem %s1, 4
        %v1168 = vld [vmem:[%s1167] sm:$0x3]
        %v1169 = vunpack.c.l.b16 %v1058
        %v1170 = vunpack.c.l.b16 %v1061
        %v1171 = vunpack.c.l.b16 %v1065
        %v1172 = vunpack.c.l.b16 %v1068
        %v1173 = vunpack.c.l.b16 %v1072
        %v1174 = vunpack.c.l.b16 %v1075
        %v1175 = vunpack.c.l.b16 %v1079
        %v1176 = vunpack.c.l.b16 %v1082
        %v1177 = vunpack.c.l.b16 %v1086
        %v1178 = vunpack.c.l.b16 %v1089
        %v1179 = vunpack.c.l.b16 %v1093
        %v1180 = vunpack.c.l.b16 %v1096
        %v1181 = vunpack.c.l.b16 %v1100
        %v1182 = vunpack.c.l.b16 %v1103
        %v1183 = vunpack.c.l.b16 %v1107
        %v1184 = vunpack.c.l.b16 %v1110
        %v1185 = vunpack.c.l.b16 %v1114
        %v1186 = vunpack.c.l.b16 %v1117
        %v1187 = vunpack.c.l.b16 %v1121
        %v1188 = vunpack.c.l.b16 %v1124
        %v1189 = vunpack.c.l.b16 %v1128
        %v1190 = vunpack.c.l.b16 %v1131
        %v1191 = vunpack.c.l.b16 %v1135
        %v1192 = vunpack.c.l.b16 %v1138
        %v1193 = vunpack.c.l.b16 %v1142
        %v1194 = vunpack.c.l.b16 %v1145
        %v1195 = vunpack.c.l.b16 %v1149
        %v1196 = vunpack.c.l.b16 %v1152
        %v1197 = vunpack.c.l.b16 %v1156
        %v1198 = vunpack.c.l.b16 %v1159
        %v1199 = vunpack.c.l.b16 %v1163
        %v1200 = vunpack.c.l.b16 %v1166
        %v1201 = vpack.c.b16 %v1170, %v1169
        %v1202 = vpack.c.b16 %v1172, %v1171
        %v1203 = vpack.c.b16 %v1174, %v1173
        %v1204 = vpack.c.b16 %v1176, %v1175
        %v1205 = vpack.c.b16 %v1178, %v1177
        %v1206 = vpack.c.b16 %v1180, %v1179
        %v1207 = vpack.c.b16 %v1182, %v1181
        %v1208 = vpack.c.b16 %v1184, %v1183
        %v1209 = vpack.c.b16 %v1186, %v1185
        %v1210 = vpack.c.b16 %v1188, %v1187
        %v1211 = vpack.c.b16 %v1190, %v1189
        %v1212 = vpack.c.b16 %v1192, %v1191
        %v1213 = vpack.c.b16 %v1194, %v1193
        %v1214 = vpack.c.b16 %v1196, %v1195
        %v1215 = vpack.c.b16 %v1198, %v1197
        %v1216 = vpack.c.b16 %v1200, %v1199
        %v1218 = vsel %vm674, %v1201, 0
        %v1221 = vsel %vm674, %v1202, 0
        %v1224 = vsel %vm674, %v1203, 0
        %v1227 = vsel %vm674, %v1204, 0
        %v1230 = vsel %vm674, %v1205, 0
        %v1233 = vsel %vm674, %v1206, 0
        %v1236 = vsel %vm674, %v1207, 0
        %v1239 = vsel %vm674, %v1208, 0
        %v1242 = vsel %vm674, %v1209, 0
        %v1245 = vsel %vm674, %v1210, 0
        %v1248 = vsel %vm674, %v1211, 0
        %v1251 = vsel %vm674, %v1212, 0
        %v1254 = vsel %vm674, %v1213, 0
        %v1257 = vsel %vm674, %v1214, 0
        %v1260 = vsel %vm674, %v1215, 0
        %v1263 = vsel %vm674, %v1216, 0
        %v1266 = vsel %vm723, %v1168, 0
        %1268 = vmatpush.bf16.msra.mxu0 0
        %1269 = vmatpush.bf16.msra.mxu0 0
        %1270 = vmatpush.bf16.msra.mxu0 0
        %1271 = vmatpush.bf16.msra.mxu0 0
        %1272 = vmatpush.bf16.msra.mxu0 0
        %1273 = vmatpush.bf16.msra.mxu0 0
        %1274 = vmatpush.bf16.msra.mxu0 0
        %1275 = vmatpush.bf16.msra.mxu0 %v1266
        %1276 = vmatmul.bf16.gmra.mxu0 %v1218
        %v1277 = vpop.f32.mrf.mxu0
        %v1278 = vadd.f32 0.0, %v1277
        %v1279 = vpop.f32.mrf.mxu0
        %v1280 = vadd.f32 0.0, %v1279
        %1281 = vmatmul.bf16.gmra.mxu0 %v1221
        %v1282 = vpop.f32.mrf.mxu0
        %v1283 = vadd.f32 0.0, %v1282
        %v1284 = vpop.f32.mrf.mxu0
        %v1285 = vadd.f32 0.0, %v1284
        %1286 = vmatmul.bf16.gmra.mxu0 %v1224
        %v1287 = vpop.f32.mrf.mxu0
        %v1288 = vadd.f32 0.0, %v1287
        %v1289 = vpop.f32.mrf.mxu0
        %v1290 = vadd.f32 0.0, %v1289
        %1291 = vmatmul.bf16.gmra.mxu0 %v1227
        %v1292 = vpop.f32.mrf.mxu0
        %v1293 = vadd.f32 0.0, %v1292
        %v1294 = vpop.f32.mrf.mxu0
        %v1295 = vadd.f32 0.0, %v1294
        %1296 = vmatmul.bf16.gmra.mxu0 %v1230
        %v1297 = vpop.f32.mrf.mxu0
        %v1298 = vadd.f32 0.0, %v1297
        %v1299 = vpop.f32.mrf.mxu0
        %v1300 = vadd.f32 0.0, %v1299
        %1301 = vmatmul.bf16.gmra.mxu0 %v1233
        %v1302 = vpop.f32.mrf.mxu0
        %v1303 = vadd.f32 0.0, %v1302
        %v1304 = vpop.f32.mrf.mxu0
        %v1305 = vadd.f32 0.0, %v1304
        %1306 = vmatmul.bf16.gmra.mxu0 %v1236
        %v1307 = vpop.f32.mrf.mxu0
        %v1308 = vadd.f32 0.0, %v1307
        %v1309 = vpop.f32.mrf.mxu0
        %v1310 = vadd.f32 0.0, %v1309
        %1311 = vmatmul.bf16.gmra.mxu0 %v1239
        %v1312 = vpop.f32.mrf.mxu0
        %v1313 = vadd.f32 0.0, %v1312
        %v1314 = vpop.f32.mrf.mxu0
        %v1315 = vadd.f32 0.0, %v1314
        %1316 = vmatmul.bf16.gmra.mxu0 %v1242
        %v1317 = vpop.f32.mrf.mxu0
        %v1318 = vadd.f32 0.0, %v1317
        %v1319 = vpop.f32.mrf.mxu0
        %v1320 = vadd.f32 0.0, %v1319
        %1321 = vmatmul.bf16.gmra.mxu0 %v1245
        %v1322 = vpop.f32.mrf.mxu0
        %v1323 = vadd.f32 0.0, %v1322
        %v1324 = vpop.f32.mrf.mxu0
        %v1325 = vadd.f32 0.0, %v1324
        %1326 = vmatmul.bf16.gmra.mxu0 %v1248
        %v1327 = vpop.f32.mrf.mxu0
        %v1328 = vadd.f32 0.0, %v1327
        %v1329 = vpop.f32.mrf.mxu0
        %v1330 = vadd.f32 0.0, %v1329
        %1331 = vmatmul.bf16.gmra.mxu0 %v1251
        %v1332 = vpop.f32.mrf.mxu0
        %v1333 = vadd.f32 0.0, %v1332
        %v1334 = vpop.f32.mrf.mxu0
        %v1335 = vadd.f32 0.0, %v1334
        %1336 = vmatmul.bf16.gmra.mxu0 %v1254
        %v1337 = vpop.f32.mrf.mxu0
        %v1338 = vadd.f32 0.0, %v1337
        %v1339 = vpop.f32.mrf.mxu0
        %v1340 = vadd.f32 0.0, %v1339
        %1341 = vmatmul.bf16.gmra.mxu0 %v1257
        %v1342 = vpop.f32.mrf.mxu0
        %v1343 = vadd.f32 0.0, %v1342
        %v1344 = vpop.f32.mrf.mxu0
        %v1345 = vadd.f32 0.0, %v1344
        %1346 = vmatmul.bf16.gmra.mxu0 %v1260
        %v1347 = vpop.f32.mrf.mxu0
        %v1348 = vadd.f32 0.0, %v1347
        %v1349 = vpop.f32.mrf.mxu0
        %v1350 = vadd.f32 0.0, %v1349
        %1351 = vmatmul.bf16.gmra.mxu0 %v1263
        %v1352 = vpop.f32.mrf.mxu0
        %v1353 = vadd.f32 0.0, %v1352
        %v1354 = vpop.f32.mrf.mxu0
        %v1355 = vadd.f32 0.0, %v1354
        %1356 = vdwg.mxu0
        %v1357 = vadd.f32 %v957, %v1278
        %v1358 = vadd.f32 %v959, %v1280
        %v1359 = vadd.f32 %v962, %v1283
        %v1360 = vadd.f32 %v964, %v1285
        %v1361 = vadd.f32 %v967, %v1288
        %v1362 = vadd.f32 %v969, %v1290
        %v1363 = vadd.f32 %v972, %v1293
        %v1364 = vadd.f32 %v974, %v1295
        %v1365 = vadd.f32 %v977, %v1298
        %v1366 = vadd.f32 %v979, %v1300
        %v1367 = vadd.f32 %v982, %v1303
        %v1368 = vadd.f32 %v984, %v1305
        %v1369 = vadd.f32 %v987, %v1308
        %v1370 = vadd.f32 %v989, %v1310
        %v1371 = vadd.f32 %v992, %v1313
        %v1372 = vadd.f32 %v994, %v1315
        %v1373 = vadd.f32 %v997, %v1318
        %v1374 = vadd.f32 %v999, %v1320
        %v1375 = vadd.f32 %v1002, %v1323
        %v1376 = vadd.f32 %v1004, %v1325
        %v1377 = vadd.f32 %v1007, %v1328
        %v1378 = vadd.f32 %v1009, %v1330
        %v1379 = vadd.f32 %v1012, %v1333
        %v1380 = vadd.f32 %v1014, %v1335
        %v1381 = vadd.f32 %v1017, %v1338
        %v1382 = vadd.f32 %v1019, %v1340
        %v1383 = vadd.f32 %v1022, %v1343
        %v1384 = vadd.f32 %v1024, %v1345
        %v1385 = vadd.f32 %v1027, %v1348
        %v1386 = vadd.f32 %v1029, %v1350
        %v1387 = vadd.f32 %v1032, %v1353
        %v1388 = vadd.f32 %v1034, %v1355
        %s1389 = scalar_lea.vmem %s1, 6
        %v1390 = vld [vmem:[%s1389] sm:$0x3]
        %v1393 = vunpack.c.l.b16 %v230
        %v1394 = vunpack.c.l.b16 %v231
        %v1395 = vpack.c.b16 %v1394, %v1393
        %v1397 = vsel %vm674, %v1395, 0
        %v1400 = vsel %vm723, %v1390, 0
        %1402 = vmatpush.bf16.msra.mxu0 0
        %1403 = vmatpush.bf16.msra.mxu0 0
        %1404 = vmatpush.bf16.msra.mxu0 0
        %1405 = vmatpush.bf16.msra.mxu0 0
        %1406 = vmatpush.bf16.msra.mxu0 0
        %1407 = vmatpush.bf16.msra.mxu0 0
        %1408 = vmatpush.bf16.msra.mxu0 0
        %1409 = vmatpush.bf16.msra.mxu0 %v1400
        %1410 = vmatmul.bf16.gmra.mxu0 %v900
        %v1411 = vpop.f32.mrf.mxu0
        %v1412 = vadd.f32 0.0, %v1411
        %v1413 = vpop.f32.mrf.mxu0
        %v1414 = vadd.f32 0.0, %v1413
        %1415 = vmatmul.bf16.gmra.mxu0 %v903
        %v1416 = vpop.f32.mrf.mxu0
        %v1417 = vadd.f32 0.0, %v1416
        %v1418 = vpop.f32.mrf.mxu0
        %v1419 = vadd.f32 0.0, %v1418
        %1420 = vmatmul.bf16.gmra.mxu0 %v906
        %v1421 = vpop.f32.mrf.mxu0
        %v1422 = vadd.f32 0.0, %v1421
        %v1423 = vpop.f32.mrf.mxu0
        %v1424 = vadd.f32 0.0, %v1423
        %1425 = vmatmul.bf16.gmra.mxu0 %v909
        %v1426 = vpop.f32.mrf.mxu0
        %v1427 = vadd.f32 0.0, %v1426
        %v1428 = vpop.f32.mrf.mxu0
        %v1429 = vadd.f32 0.0, %v1428
        %1430 = vmatmul.bf16.gmra.mxu0 %v912
        %v1431 = vpop.f32.mrf.mxu0
        %v1432 = vadd.f32 0.0, %v1431
        %v1433 = vpop.f32.mrf.mxu0
        %v1434 = vadd.f32 0.0, %v1433
        %1435 = vmatmul.bf16.gmra.mxu0 %v915
        %v1436 = vpop.f32.mrf.mxu0
        %v1437 = vadd.f32 0.0, %v1436
        %v1438 = vpop.f32.mrf.mxu0
        %v1439 = vadd.f32 0.0, %v1438
        %1440 = vmatmul.bf16.gmra.mxu0 %v918
        %v1441 = vpop.f32.mrf.mxu0
        %v1442 = vadd.f32 0.0, %v1441
        %v1443 = vpop.f32.mrf.mxu0
        %v1444 = vadd.f32 0.0, %v1443
        %1445 = vmatmul.bf16.gmra.mxu0 %v921
        %v1446 = vpop.f32.mrf.mxu0
        %v1447 = vadd.f32 0.0, %v1446
        %v1448 = vpop.f32.mrf.mxu0
        %v1449 = vadd.f32 0.0, %v1448
        %1450 = vmatmul.bf16.gmra.mxu0 %v924
        %v1451 = vpop.f32.mrf.mxu0
        %v1452 = vadd.f32 0.0, %v1451
        %v1453 = vpop.f32.mrf.mxu0
        %v1454 = vadd.f32 0.0, %v1453
        %1455 = vmatmul.bf16.gmra.mxu0 %v927
        %v1456 = vpop.f32.mrf.mxu0
        %v1457 = vadd.f32 0.0, %v1456
        %v1458 = vpop.f32.mrf.mxu0
        %v1459 = vadd.f32 0.0, %v1458
        %1460 = vmatmul.bf16.gmra.mxu0 %v930
        %v1461 = vpop.f32.mrf.mxu0
        %v1462 = vadd.f32 0.0, %v1461
        %v1463 = vpop.f32.mrf.mxu0
        %v1464 = vadd.f32 0.0, %v1463
        %1465 = vmatmul.bf16.gmra.mxu0 %v933
        %v1466 = vpop.f32.mrf.mxu0
        %v1467 = vadd.f32 0.0, %v1466
        %v1468 = vpop.f32.mrf.mxu0
        %v1469 = vadd.f32 0.0, %v1468
        %1470 = vmatmul.bf16.gmra.mxu0 %v936
        %v1471 = vpop.f32.mrf.mxu0
        %v1472 = vadd.f32 0.0, %v1471
        %v1473 = vpop.f32.mrf.mxu0
        %v1474 = vadd.f32 0.0, %v1473
        %1475 = vmatmul.bf16.gmra.mxu0 %v939
        %v1476 = vpop.f32.mrf.mxu0
        %v1477 = vadd.f32 0.0, %v1476
        %v1478 = vpop.f32.mrf.mxu0
        %v1479 = vadd.f32 0.0, %v1478
        %1480 = vmatmul.bf16.gmra.mxu0 %v942
        %v1481 = vpop.f32.mrf.mxu0
        %v1482 = vadd.f32 0.0, %v1481
        %v1483 = vpop.f32.mrf.mxu0
        %v1484 = vadd.f32 0.0, %v1483
        %1485 = vmatmul.bf16.gmra.mxu0 %v1397
        %v1486 = vpop.f32.mrf.mxu0
        %v1487 = vadd.f32 0.0, %v1486
        %v1488 = vpop.f32.mrf.mxu0
        %v1489 = vadd.f32 0.0, %v1488
        %1490 = vdwg.mxu0
        %v1491 = vadd.f32 %v1357, %v1412
        %v1492 = vadd.f32 %v1358, %v1414
        %v1493 = vadd.f32 %v1359, %v1417
        %v1494 = vadd.f32 %v1360, %v1419
        %v1495 = vadd.f32 %v1361, %v1422
        %v1496 = vadd.f32 %v1362, %v1424
        %v1497 = vadd.f32 %v1363, %v1427
        %v1498 = vadd.f32 %v1364, %v1429
        %v1499 = vadd.f32 %v1365, %v1432
        %v1500 = vadd.f32 %v1366, %v1434
        %v1501 = vadd.f32 %v1367, %v1437
        %v1502 = vadd.f32 %v1368, %v1439
        %v1503 = vadd.f32 %v1369, %v1442
        %v1504 = vadd.f32 %v1370, %v1444
        %v1505 = vadd.f32 %v1371, %v1447
        %v1506 = vadd.f32 %v1372, %v1449
        %v1507 = vadd.f32 %v1373, %v1452
        %v1508 = vadd.f32 %v1374, %v1454
        %v1509 = vadd.f32 %v1375, %v1457
        %v1510 = vadd.f32 %v1376, %v1459
        %v1511 = vadd.f32 %v1377, %v1462
        %v1512 = vadd.f32 %v1378, %v1464
        %v1513 = vadd.f32 %v1379, %v1467
        %v1514 = vadd.f32 %v1380, %v1469
        %v1515 = vadd.f32 %v1381, %v1472
        %v1516 = vadd.f32 %v1382, %v1474
        %v1517 = vadd.f32 %v1383, %v1477
        %v1518 = vadd.f32 %v1384, %v1479
        %v1519 = vadd.f32 %v1385, %v1482
        %v1520 = vadd.f32 %v1386, %v1484
        %v1521 = vadd.f32 %v1387, %v1487
        %v1522 = vadd.f32 %v1388, %v1489
        %v1524 = vshrl.u32 %v230, 16
        %v1526 = vrot.slane %v1524, 4
        %v1527 = vshll.u32 %v230, 16
        %v1529 = vrot.slane %v1527, 5
        %v1530 = vor.u32 %v1526, %v1529
        %v1531 = vrot.slane %v1530, 4
        %v1533 = vshll.u32 %v231, 16
        %v1535 = vrot.slane %v1533, 5
        %v1536 = vsel %vm239, %v1531, %v1535
        %v1537 = vshrl.u32 %v231, 16
        %v1539 = vrot.slane %v1537, 4
        %v1540 = vor.u32 %v1539, %v1535
        %v1541 = vrot.slane %v1540, 4
        %v1543 = vshll.u32 %v232, 16
        %v1545 = vrot.slane %v1543, 5
        %v1546 = vsel %vm239, %v1541, %v1545
        %s1547 = scalar_lea.vmem %s1, 8
        %v1548 = vld [vmem:[%s1547] sm:$0x3]
        %v1549 = vunpack.c.l.b16 %v1536
        %v1550 = vunpack.c.l.b16 %v1546
        %v1551 = vpack.c.b16 %v1550, %v1549
        %v1553 = vsel %vm674, %v1551, 0
        %v1556 = vsel %vm723, %v1548, 0
        %1558 = vmatpush.bf16.msra.mxu0 0
        %1559 = vmatpush.bf16.msra.mxu0 0
        %1560 = vmatpush.bf16.msra.mxu0 0
        %1561 = vmatpush.bf16.msra.mxu0 0
        %1562 = vmatpush.bf16.msra.mxu0 0
        %1563 = vmatpush.bf16.msra.mxu0 0
        %1564 = vmatpush.bf16.msra.mxu0 0
        %1565 = vmatpush.bf16.msra.mxu0 %v1556
        %1566 = vmatmul.bf16.gmra.mxu0 %v679
        %v1567 = vpop.f32.mrf.mxu0
        %v1568 = vadd.f32 0.0, %v1567
        %v1569 = vpop.f32.mrf.mxu0
        %v1570 = vadd.f32 0.0, %v1569
        %1571 = vmatmul.bf16.gmra.mxu0 %v682
        %v1572 = vpop.f32.mrf.mxu0
        %v1573 = vadd.f32 0.0, %v1572
        %v1574 = vpop.f32.mrf.mxu0
        %v1575 = vadd.f32 0.0, %v1574
        %1576 = vmatmul.bf16.gmra.mxu0 %v685
        %v1577 = vpop.f32.mrf.mxu0
        %v1578 = vadd.f32 0.0, %v1577
        %v1579 = vpop.f32.mrf.mxu0
        %v1580 = vadd.f32 0.0, %v1579
        %1581 = vmatmul.bf16.gmra.mxu0 %v688
        %v1582 = vpop.f32.mrf.mxu0
        %v1583 = vadd.f32 0.0, %v1582
        %v1584 = vpop.f32.mrf.mxu0
        %v1585 = vadd.f32 0.0, %v1584
        %1586 = vmatmul.bf16.gmra.mxu0 %v691
        %v1587 = vpop.f32.mrf.mxu0
        %v1588 = vadd.f32 0.0, %v1587
        %v1589 = vpop.f32.mrf.mxu0
        %v1590 = vadd.f32 0.0, %v1589
        %1591 = vmatmul.bf16.gmra.mxu0 %v694
        %v1592 = vpop.f32.mrf.mxu0
        %v1593 = vadd.f32 0.0, %v1592
        %v1594 = vpop.f32.mrf.mxu0
        %v1595 = vadd.f32 0.0, %v1594
        %1596 = vmatmul.bf16.gmra.mxu0 %v697
        %v1597 = vpop.f32.mrf.mxu0
        %v1598 = vadd.f32 0.0, %v1597
        %v1599 = vpop.f32.mrf.mxu0
        %v1600 = vadd.f32 0.0, %v1599
        %1601 = vmatmul.bf16.gmra.mxu0 %v700
        %v1602 = vpop.f32.mrf.mxu0
        %v1603 = vadd.f32 0.0, %v1602
        %v1604 = vpop.f32.mrf.mxu0
        %v1605 = vadd.f32 0.0, %v1604
        %1606 = vmatmul.bf16.gmra.mxu0 %v703
        %v1607 = vpop.f32.mrf.mxu0
        %v1608 = vadd.f32 0.0, %v1607
        %v1609 = vpop.f32.mrf.mxu0
        %v1610 = vadd.f32 0.0, %v1609
        %1611 = vmatmul.bf16.gmra.mxu0 %v706
        %v1612 = vpop.f32.mrf.mxu0
        %v1613 = vadd.f32 0.0, %v1612
        %v1614 = vpop.f32.mrf.mxu0
        %v1615 = vadd.f32 0.0, %v1614
        %1616 = vmatmul.bf16.gmra.mxu0 %v709
        %v1617 = vpop.f32.mrf.mxu0
        %v1618 = vadd.f32 0.0, %v1617
        %v1619 = vpop.f32.mrf.mxu0
        %v1620 = vadd.f32 0.0, %v1619
        %1621 = vmatmul.bf16.gmra.mxu0 %v712
        %v1622 = vpop.f32.mrf.mxu0
        %v1623 = vadd.f32 0.0, %v1622
        %v1624 = vpop.f32.mrf.mxu0
        %v1625 = vadd.f32 0.0, %v1624
        %1626 = vmatmul.bf16.gmra.mxu0 %v715
        %v1627 = vpop.f32.mrf.mxu0
        %v1628 = vadd.f32 0.0, %v1627
        %v1629 = vpop.f32.mrf.mxu0
        %v1630 = vadd.f32 0.0, %v1629
        %1631 = vmatmul.bf16.gmra.mxu0 %v718
        %v1632 = vpop.f32.mrf.mxu0
        %v1633 = vadd.f32 0.0, %v1632
        %v1634 = vpop.f32.mrf.mxu0
        %v1635 = vadd.f32 0.0, %v1634
        %1636 = vmatmul.bf16.gmra.mxu0 %v721
        %v1637 = vpop.f32.mrf.mxu0
        %v1638 = vadd.f32 0.0, %v1637
        %v1639 = vpop.f32.mrf.mxu0
        %v1640 = vadd.f32 0.0, %v1639
        %1641 = vmatmul.bf16.gmra.mxu0 %v1553
        %v1642 = vpop.f32.mrf.mxu0
        %v1643 = vadd.f32 0.0, %v1642
        %v1644 = vpop.f32.mrf.mxu0
        %v1645 = vadd.f32 0.0, %v1644
        %1646 = vdwg.mxu0
        %v1647 = vadd.f32 %v1491, %v1568
        %v1648 = vadd.f32 %v1492, %v1570
        %v1649 = vadd.f32 %v1493, %v1573
        %v1650 = vadd.f32 %v1494, %v1575
        %v1651 = vadd.f32 %v1495, %v1578
        %v1652 = vadd.f32 %v1496, %v1580
        %v1653 = vadd.f32 %v1497, %v1583
        %v1654 = vadd.f32 %v1498, %v1585
        %v1655 = vadd.f32 %v1499, %v1588
        %v1656 = vadd.f32 %v1500, %v1590
        %v1657 = vadd.f32 %v1501, %v1593
        %v1658 = vadd.f32 %v1502, %v1595
        %v1659 = vadd.f32 %v1503, %v1598
        %v1660 = vadd.f32 %v1504, %v1600
        %v1661 = vadd.f32 %v1505, %v1603
        %v1662 = vadd.f32 %v1506, %v1605
        %v1663 = vadd.f32 %v1507, %v1608
        %v1664 = vadd.f32 %v1508, %v1610
        %v1665 = vadd.f32 %v1509, %v1613
        %v1666 = vadd.f32 %v1510, %v1615
        %v1667 = vadd.f32 %v1511, %v1618
        %v1668 = vadd.f32 %v1512, %v1620
        %v1669 = vadd.f32 %v1513, %v1623
        %v1670 = vadd.f32 %v1514, %v1625
        %v1671 = vadd.f32 %v1515, %v1628
        %v1672 = vadd.f32 %v1516, %v1630
        %v1673 = vadd.f32 %v1517, %v1633
        %v1674 = vadd.f32 %v1518, %v1635
        %v1675 = vadd.f32 %v1519, %v1638
        %v1676 = vadd.f32 %v1520, %v1640
        %v1677 = vadd.f32 %v1521, %v1643
        %v1678 = vadd.f32 %v1522, %v1645
        %v1680 = vrot.slane %v230, 5
        %v1681 = vrot.slane %v1680, 4
        %v1682 = vrot.slane %v231, 5
        %v1683 = vsel %vm1054, %v1681, %v1682
        %v1684 = vrot.slane %v1682, 4
        %v1685 = vrot.slane %v232, 5
        %v1686 = vsel %vm1054, %v1684, %v1685
        %s1687 = scalar_lea.vmem %s1, 10
        %v1688 = vld [vmem:[%s1687] sm:$0x3]
        %v1689 = vunpack.c.l.b16 %v1683
        %v1690 = vunpack.c.l.b16 %v1686
        %v1691 = vpack.c.b16 %v1690, %v1689
        %v1693 = vsel %vm674, %v1691, 0
        %v1696 = vsel %vm723, %v1688, 0
        %1698 = vmatpush.bf16.msra.mxu0 0
        %1699 = vmatpush.bf16.msra.mxu0 0
        %1700 = vmatpush.bf16.msra.mxu0 0
        %1701 = vmatpush.bf16.msra.mxu0 0
        %1702 = vmatpush.bf16.msra.mxu0 0
        %1703 = vmatpush.bf16.msra.mxu0 0
        %1704 = vmatpush.bf16.msra.mxu0 0
        %1705 = vmatpush.bf16.msra.mxu0 %v1696
        %1706 = vmatmul.bf16.gmra.mxu0 %v1221
        %v1707 = vpop.f32.mrf.mxu0
        %v1708 = vadd.f32 0.0, %v1707
        %v1709 = vpop.f32.mrf.mxu0
        %v1710 = vadd.f32 0.0, %v1709
        %1711 = vmatmul.bf16.gmra.mxu0 %v1224
        %v1712 = vpop.f32.mrf.mxu0
        %v1713 = vadd.f32 0.0, %v1712
        %v1714 = vpop.f32.mrf.mxu0
        %v1715 = vadd.f32 0.0, %v1714
        %1716 = vmatmul.bf16.gmra.mxu0 %v1227
        %v1717 = vpop.f32.mrf.mxu0
        %v1718 = vadd.f32 0.0, %v1717
        %v1719 = vpop.f32.mrf.mxu0
        %v1720 = vadd.f32 0.0, %v1719
        %1721 = vmatmul.bf16.gmra.mxu0 %v1230
        %v1722 = vpop.f32.mrf.mxu0
        %v1723 = vadd.f32 0.0, %v1722
        %v1724 = vpop.f32.mrf.mxu0
        %v1725 = vadd.f32 0.0, %v1724
        %1726 = vmatmul.bf16.gmra.mxu0 %v1233
        %v1727 = vpop.f32.mrf.mxu0
        %v1728 = vadd.f32 0.0, %v1727
        %v1729 = vpop.f32.mrf.mxu0
        %v1730 = vadd.f32 0.0, %v1729
        %1731 = vmatmul.bf16.gmra.mxu0 %v1236
        %v1732 = vpop.f32.mrf.mxu0
        %v1733 = vadd.f32 0.0, %v1732
        %v1734 = vpop.f32.mrf.mxu0
        %v1735 = vadd.f32 0.0, %v1734
        %1736 = vmatmul.bf16.gmra.mxu0 %v1239
        %v1737 = vpop.f32.mrf.mxu0
        %v1738 = vadd.f32 0.0, %v1737
        %v1739 = vpop.f32.mrf.mxu0
        %v1740 = vadd.f32 0.0, %v1739
        %1741 = vmatmul.bf16.gmra.mxu0 %v1242
        %v1742 = vpop.f32.mrf.mxu0
        %v1743 = vadd.f32 0.0, %v1742
        %v1744 = vpop.f32.mrf.mxu0
        %v1745 = vadd.f32 0.0, %v1744
        %1746 = vmatmul.bf16.gmra.mxu0 %v1245
        %v1747 = vpop.f32.mrf.mxu0
        %v1748 = vadd.f32 0.0, %v1747
        %v1749 = vpop.f32.mrf.mxu0
        %v1750 = vadd.f32 0.0, %v1749
        %1751 = vmatmul.bf16.gmra.mxu0 %v1248
        %v1752 = vpop.f32.mrf.mxu0
        %v1753 = vadd.f32 0.0, %v1752
        %v1754 = vpop.f32.mrf.mxu0
        %v1755 = vadd.f32 0.0, %v1754
        %1756 = vmatmul.bf16.gmra.mxu0 %v1251
        %v1757 = vpop.f32.mrf.mxu0
        %v1758 = vadd.f32 0.0, %v1757
        %v1759 = vpop.f32.mrf.mxu0
        %v1760 = vadd.f32 0.0, %v1759
        %1761 = vmatmul.bf16.gmra.mxu0 %v1254
        %v1762 = vpop.f32.mrf.mxu0
        %v1763 = vadd.f32 0.0, %v1762
        %v1764 = vpop.f32.mrf.mxu0
        %v1765 = vadd.f32 0.0, %v1764
        %1766 = vmatmul.bf16.gmra.mxu0 %v1257
        %v1767 = vpop.f32.mrf.mxu0
        %v1768 = vadd.f32 0.0, %v1767
        %v1769 = vpop.f32.mrf.mxu0
        %v1770 = vadd.f32 0.0, %v1769
        %1771 = vmatmul.bf16.gmra.mxu0 %v1260
        %v1772 = vpop.f32.mrf.mxu0
        %v1773 = vadd.f32 0.0, %v1772
        %v1774 = vpop.f32.mrf.mxu0
        %v1775 = vadd.f32 0.0, %v1774
        %1776 = vmatmul.bf16.gmra.mxu0 %v1263
        %v1777 = vpop.f32.mrf.mxu0
        %v1778 = vadd.f32 0.0, %v1777
        %v1779 = vpop.f32.mrf.mxu0
        %v1780 = vadd.f32 0.0, %v1779
        %1781 = vmatmul.bf16.gmra.mxu0 %v1693
        %v1782 = vpop.f32.mrf.mxu0
        %v1783 = vadd.f32 0.0, %v1782
        %v1784 = vpop.f32.mrf.mxu0
        %v1785 = vadd.f32 0.0, %v1784
        %1786 = vdwg.mxu0
        %v1787 = vadd.f32 %v1647, %v1708
        %v1788 = vadd.f32 %v1648, %v1710
        %v1789 = vadd.f32 %v1649, %v1713
        %v1790 = vadd.f32 %v1650, %v1715
        %v1791 = vadd.f32 %v1651, %v1718
        %v1792 = vadd.f32 %v1652, %v1720
        %v1793 = vadd.f32 %v1653, %v1723
        %v1794 = vadd.f32 %v1654, %v1725
        %v1795 = vadd.f32 %v1655, %v1728
        %v1796 = vadd.f32 %v1656, %v1730
        %v1797 = vadd.f32 %v1657, %v1733
        %v1798 = vadd.f32 %v1658, %v1735
        %v1799 = vadd.f32 %v1659, %v1738
        %v1800 = vadd.f32 %v1660, %v1740
        %v1801 = vadd.f32 %v1661, %v1743
        %v1802 = vadd.f32 %v1662, %v1745
        %v1803 = vadd.f32 %v1663, %v1748
        %v1804 = vadd.f32 %v1664, %v1750
        %v1805 = vadd.f32 %v1665, %v1753
        %v1806 = vadd.f32 %v1666, %v1755
        %v1807 = vadd.f32 %v1667, %v1758
        %v1808 = vadd.f32 %v1668, %v1760
        %v1809 = vadd.f32 %v1669, %v1763
        %v1810 = vadd.f32 %v1670, %v1765
        %v1811 = vadd.f32 %v1671, %v1768
        %v1812 = vadd.f32 %v1672, %v1770
        %v1813 = vadd.f32 %v1673, %v1773
        %v1814 = vadd.f32 %v1674, %v1775
        %v1815 = vadd.f32 %v1675, %v1778
        %v1816 = vadd.f32 %v1676, %v1780
        %v1817 = vadd.f32 %v1677, %v1783
        %v1818 = vadd.f32 %v1678, %v1785
        %s1819 = scalar_lea.vmem %s1, 12
        %v1820 = vld [vmem:[%s1819] sm:$0x3]
        %v1823 = vunpack.c.l.b16 %v233
        %v1824 = vunpack.c.l.b16 %v234
        %v1825 = vpack.c.b16 %v1824, %v1823
        %v1827 = vsel %vm674, %v1825, 0
        %v1830 = vsel %vm723, %v1820, 0
        %1832 = vmatpush.bf16.msra.mxu0 0
        %1833 = vmatpush.bf16.msra.mxu0 0
        %1834 = vmatpush.bf16.msra.mxu0 0
        %1835 = vmatpush.bf16.msra.mxu0 0
        %1836 = vmatpush.bf16.msra.mxu0 0
        %1837 = vmatpush.bf16.msra.mxu0 0
        %1838 = vmatpush.bf16.msra.mxu0 0
        %1839 = vmatpush.bf16.msra.mxu0 %v1830
        %1840 = vmatmul.bf16.gmra.mxu0 %v903
        %v1841 = vpop.f32.mrf.mxu0
        %v1842 = vadd.f32 0.0, %v1841
        %v1843 = vpop.f32.mrf.mxu0
        %v1844 = vadd.f32 0.0, %v1843
        %1845 = vmatmul.bf16.gmra.mxu0 %v906
        %v1846 = vpop.f32.mrf.mxu0
        %v1847 = vadd.f32 0.0, %v1846
        %v1848 = vpop.f32.mrf.mxu0
        %v1849 = vadd.f32 0.0, %v1848
        %1850 = vmatmul.bf16.gmra.mxu0 %v909
        %v1851 = vpop.f32.mrf.mxu0
        %v1852 = vadd.f32 0.0, %v1851
        %v1853 = vpop.f32.mrf.mxu0
        %v1854 = vadd.f32 0.0, %v1853
        %1855 = vmatmul.bf16.gmra.mxu0 %v912
        %v1856 = vpop.f32.mrf.mxu0
        %v1857 = vadd.f32 0.0, %v1856
        %v1858 = vpop.f32.mrf.mxu0
        %v1859 = vadd.f32 0.0, %v1858
        %1860 = vmatmul.bf16.gmra.mxu0 %v915
        %v1861 = vpop.f32.mrf.mxu0
        %v1862 = vadd.f32 0.0, %v1861
        %v1863 = vpop.f32.mrf.mxu0
        %v1864 = vadd.f32 0.0, %v1863
        %1865 = vmatmul.bf16.gmra.mxu0 %v918
        %v1866 = vpop.f32.mrf.mxu0
        %v1867 = vadd.f32 0.0, %v1866
        %v1868 = vpop.f32.mrf.mxu0
        %v1869 = vadd.f32 0.0, %v1868
        %1870 = vmatmul.bf16.gmra.mxu0 %v921
        %v1871 = vpop.f32.mrf.mxu0
        %v1872 = vadd.f32 0.0, %v1871
        %v1873 = vpop.f32.mrf.mxu0
        %v1874 = vadd.f32 0.0, %v1873
        %1875 = vmatmul.bf16.gmra.mxu0 %v924
        %v1876 = vpop.f32.mrf.mxu0
        %v1877 = vadd.f32 0.0, %v1876
        %v1878 = vpop.f32.mrf.mxu0
        %v1879 = vadd.f32 0.0, %v1878
        %1880 = vmatmul.bf16.gmra.mxu0 %v927
        %v1881 = vpop.f32.mrf.mxu0
        %v1882 = vadd.f32 0.0, %v1881
        %v1883 = vpop.f32.mrf.mxu0
        %v1884 = vadd.f32 0.0, %v1883
        %1885 = vmatmul.bf16.gmra.mxu0 %v930
        %v1886 = vpop.f32.mrf.mxu0
        %v1887 = vadd.f32 0.0, %v1886
        %v1888 = vpop.f32.mrf.mxu0
        %v1889 = vadd.f32 0.0, %v1888
        %1890 = vmatmul.bf16.gmra.mxu0 %v933
        %v1891 = vpop.f32.mrf.mxu0
        %v1892 = vadd.f32 0.0, %v1891
        %v1893 = vpop.f32.mrf.mxu0
        %v1894 = vadd.f32 0.0, %v1893
        %1895 = vmatmul.bf16.gmra.mxu0 %v936
        %v1896 = vpop.f32.mrf.mxu0
        %v1897 = vadd.f32 0.0, %v1896
        %v1898 = vpop.f32.mrf.mxu0
        %v1899 = vadd.f32 0.0, %v1898
        %1900 = vmatmul.bf16.gmra.mxu0 %v939
        %v1901 = vpop.f32.mrf.mxu0
        %v1902 = vadd.f32 0.0, %v1901
        %v1903 = vpop.f32.mrf.mxu0
        %v1904 = vadd.f32 0.0, %v1903
        %1905 = vmatmul.bf16.gmra.mxu0 %v942
        %v1906 = vpop.f32.mrf.mxu0
        %v1907 = vadd.f32 0.0, %v1906
        %v1908 = vpop.f32.mrf.mxu0
        %v1909 = vadd.f32 0.0, %v1908
        %1910 = vmatmul.bf16.gmra.mxu0 %v1397
        %v1911 = vpop.f32.mrf.mxu0
        %v1912 = vadd.f32 0.0, %v1911
        %v1913 = vpop.f32.mrf.mxu0
        %v1914 = vadd.f32 0.0, %v1913
        %1915 = vmatmul.bf16.gmra.mxu0 %v1827
        %v1916 = vpop.f32.mrf.mxu0
        %v1917 = vadd.f32 0.0, %v1916
        %v1918 = vpop.f32.mrf.mxu0
        %v1919 = vadd.f32 0.0, %v1918
        %1920 = vdwg.mxu0
        %v1921 = vadd.f32 %v1787, %v1842
        %v1922 = vadd.f32 %v1788, %v1844
        %v1923 = vadd.f32 %v1789, %v1847
        %v1924 = vadd.f32 %v1790, %v1849
        %v1925 = vadd.f32 %v1791, %v1852
        %v1926 = vadd.f32 %v1792, %v1854
        %v1927 = vadd.f32 %v1793, %v1857
        %v1928 = vadd.f32 %v1794, %v1859
        %v1929 = vadd.f32 %v1795, %v1862
        %v1930 = vadd.f32 %v1796, %v1864
        %v1931 = vadd.f32 %v1797, %v1867
        %v1932 = vadd.f32 %v1798, %v1869
        %v1933 = vadd.f32 %v1799, %v1872
        %v1934 = vadd.f32 %v1800, %v1874
        %v1935 = vadd.f32 %v1801, %v1877
        %v1936 = vadd.f32 %v1802, %v1879
        %v1937 = vadd.f32 %v1803, %v1882
        %v1938 = vadd.f32 %v1804, %v1884
        %v1939 = vadd.f32 %v1805, %v1887
        %v1940 = vadd.f32 %v1806, %v1889
        %v1941 = vadd.f32 %v1807, %v1892
        %v1942 = vadd.f32 %v1808, %v1894
        %v1943 = vadd.f32 %v1809, %v1897
        %v1944 = vadd.f32 %v1810, %v1899
        %v1945 = vadd.f32 %v1811, %v1902
        %v1946 = vadd.f32 %v1812, %v1904
        %v1947 = vadd.f32 %v1813, %v1907
        %v1948 = vadd.f32 %v1814, %v1909
        %v1949 = vadd.f32 %v1815, %v1912
        %v1950 = vadd.f32 %v1816, %v1914
        %v1951 = vadd.f32 %v1817, %v1917
        %v1952 = vadd.f32 %v1818, %v1919
        %v1954 = vshrl.u32 %v233, 16
        %v1956 = vrot.slane %v1954, 4
        %v1957 = vshll.u32 %v233, 16
        %v1959 = vrot.slane %v1957, 5
        %v1960 = vor.u32 %v1956, %v1959
        %v1961 = vrot.slane %v1960, 4
        %v1963 = vshll.u32 %v234, 16
        %v1965 = vrot.slane %v1963, 5
        %v1966 = vsel %vm239, %v1961, %v1965
        %v1967 = vshrl.u32 %v234, 16
        %v1969 = vrot.slane %v1967, 4
        %v1970 = vor.u32 %v1969, %v1965
        %v1971 = vrot.slane %v1970, 4
        %v1973 = vshll.u32 %v235, 16
        %v1975 = vrot.slane %v1973, 5
        %v1976 = vsel %vm239, %v1971, %v1975
        %s1977 = scalar_lea.vmem %s1, 14
        %v1978 = vld [vmem:[%s1977] sm:$0x3]
        %v1979 = vunpack.c.l.b16 %v1966
        %v1980 = vunpack.c.l.b16 %v1976
        %v1981 = vpack.c.b16 %v1980, %v1979
        %v1983 = vsel %vm674, %v1981, 0
        %v1986 = vsel %vm723, %v1978, 0
        %1988 = vmatpush.bf16.msra.mxu0 0
        %1989 = vmatpush.bf16.msra.mxu0 0
        %1990 = vmatpush.bf16.msra.mxu0 0
        %1991 = vmatpush.bf16.msra.mxu0 0
        %1992 = vmatpush.bf16.msra.mxu0 0
        %1993 = vmatpush.bf16.msra.mxu0 0
        %1994 = vmatpush.bf16.msra.mxu0 0
        %1995 = vmatpush.bf16.msra.mxu0 %v1986
        %1996 = vmatmul.bf16.gmra.mxu0 %v682
        %v1997 = vpop.f32.mrf.mxu0
        %v1998 = vadd.f32 0.0, %v1997
        %v1999 = vpop.f32.mrf.mxu0
        %v2000 = vadd.f32 0.0, %v1999
        %2001 = vmatmul.bf16.gmra.mxu0 %v685
        %v2002 = vpop.f32.mrf.mxu0
        %v2003 = vadd.f32 0.0, %v2002
        %v2004 = vpop.f32.mrf.mxu0
        %v2005 = vadd.f32 0.0, %v2004
        %2006 = vmatmul.bf16.gmra.mxu0 %v688
        %v2007 = vpop.f32.mrf.mxu0
        %v2008 = vadd.f32 0.0, %v2007
        %v2009 = vpop.f32.mrf.mxu0
        %v2010 = vadd.f32 0.0, %v2009
        %2011 = vmatmul.bf16.gmra.mxu0 %v691
        %v2012 = vpop.f32.mrf.mxu0
        %v2013 = vadd.f32 0.0, %v2012
        %v2014 = vpop.f32.mrf.mxu0
        %v2015 = vadd.f32 0.0, %v2014
        %2016 = vmatmul.bf16.gmra.mxu0 %v694
        %v2017 = vpop.f32.mrf.mxu0
        %v2018 = vadd.f32 0.0, %v2017
        %v2019 = vpop.f32.mrf.mxu0
        %v2020 = vadd.f32 0.0, %v2019
        %2021 = vmatmul.bf16.gmra.mxu0 %v697
        %v2022 = vpop.f32.mrf.mxu0
        %v2023 = vadd.f32 0.0, %v2022
        %v2024 = vpop.f32.mrf.mxu0
        %v2025 = vadd.f32 0.0, %v2024
        %2026 = vmatmul.bf16.gmra.mxu0 %v700
        %v2027 = vpop.f32.mrf.mxu0
        %v2028 = vadd.f32 0.0, %v2027
        %v2029 = vpop.f32.mrf.mxu0
        %v2030 = vadd.f32 0.0, %v2029
        %2031 = vmatmul.bf16.gmra.mxu0 %v703
        %v2032 = vpop.f32.mrf.mxu0
        %v2033 = vadd.f32 0.0, %v2032
        %v2034 = vpop.f32.mrf.mxu0
        %v2035 = vadd.f32 0.0, %v2034
        %2036 = vmatmul.bf16.gmra.mxu0 %v706
        %v2037 = vpop.f32.mrf.mxu0
        %v2038 = vadd.f32 0.0, %v2037
        %v2039 = vpop.f32.mrf.mxu0
        %v2040 = vadd.f32 0.0, %v2039
        %2041 = vmatmul.bf16.gmra.mxu0 %v709
        %v2042 = vpop.f32.mrf.mxu0
        %v2043 = vadd.f32 0.0, %v2042
        %v2044 = vpop.f32.mrf.mxu0
        %v2045 = vadd.f32 0.0, %v2044
        %2046 = vmatmul.bf16.gmra.mxu0 %v712
        %v2047 = vpop.f32.mrf.mxu0
        %v2048 = vadd.f32 0.0, %v2047
        %v2049 = vpop.f32.mrf.mxu0
        %v2050 = vadd.f32 0.0, %v2049
        %2051 = vmatmul.bf16.gmra.mxu0 %v715
        %v2052 = vpop.f32.mrf.mxu0
        %v2053 = vadd.f32 0.0, %v2052
        %v2054 = vpop.f32.mrf.mxu0
        %v2055 = vadd.f32 0.0, %v2054
        %2056 = vmatmul.bf16.gmra.mxu0 %v718
        %v2057 = vpop.f32.mrf.mxu0
        %v2058 = vadd.f32 0.0, %v2057
        %v2059 = vpop.f32.mrf.mxu0
        %v2060 = vadd.f32 0.0, %v2059
        %2061 = vmatmul.bf16.gmra.mxu0 %v721
        %v2062 = vpop.f32.mrf.mxu0
        %v2063 = vadd.f32 0.0, %v2062
        %v2064 = vpop.f32.mrf.mxu0
        %v2065 = vadd.f32 0.0, %v2064
        %2066 = vmatmul.bf16.gmra.mxu0 %v1553
        %v2067 = vpop.f32.mrf.mxu0
        %v2068 = vadd.f32 0.0, %v2067
        %v2069 = vpop.f32.mrf.mxu0
        %v2070 = vadd.f32 0.0, %v2069
        %2071 = vmatmul.bf16.gmra.mxu0 %v1983
        %v2072 = vpop.f32.mrf.mxu0
        %v2073 = vadd.f32 0.0, %v2072
        %v2074 = vpop.f32.mrf.mxu0
        %v2075 = vadd.f32 0.0, %v2074
        %2076 = vdwg.mxu0
        %v2077 = vadd.f32 %v1921, %v1998
        %v2078 = vadd.f32 %v1922, %v2000
        %v2079 = vadd.f32 %v1923, %v2003
        %v2080 = vadd.f32 %v1924, %v2005
        %v2081 = vadd.f32 %v1925, %v2008
        %v2082 = vadd.f32 %v1926, %v2010
        %v2083 = vadd.f32 %v1927, %v2013
        %v2084 = vadd.f32 %v1928, %v2015
        %v2085 = vadd.f32 %v1929, %v2018
        %v2086 = vadd.f32 %v1930, %v2020
        %v2087 = vadd.f32 %v1931, %v2023
        %v2088 = vadd.f32 %v1932, %v2025
        %v2089 = vadd.f32 %v1933, %v2028
        %v2090 = vadd.f32 %v1934, %v2030
        %v2091 = vadd.f32 %v1935, %v2033
        %v2092 = vadd.f32 %v1936, %v2035
        %v2093 = vadd.f32 %v1937, %v2038
        %v2094 = vadd.f32 %v1938, %v2040
        %v2095 = vadd.f32 %v1939, %v2043
        %v2096 = vadd.f32 %v1940, %v2045
        %v2097 = vadd.f32 %v1941, %v2048
        %v2098 = vadd.f32 %v1942, %v2050
        %v2099 = vadd.f32 %v1943, %v2053
        %v2100 = vadd.f32 %v1944, %v2055
        %v2101 = vadd.f32 %v1945, %v2058
        %v2102 = vadd.f32 %v1946, %v2060
        %v2103 = vadd.f32 %v1947, %v2063
        %v2104 = vadd.f32 %v1948, %v2065
        %v2105 = vadd.f32 %v1949, %v2068
        %v2106 = vadd.f32 %v1950, %v2070
        %v2107 = vadd.f32 %v1951, %v2073
        %v2108 = vadd.f32 %v1952, %v2075
        %v2110 = vrot.slane %v233, 5
        %v2111 = vrot.slane %v2110, 4
        %v2112 = vrot.slane %v234, 5
        %v2113 = vsel %vm1054, %v2111, %v2112
        %v2114 = vrot.slane %v2112, 4
        %v2115 = vrot.slane %v235, 5
        %v2116 = vsel %vm1054, %v2114, %v2115
        %s2117 = scalar_lea.vmem %s1, 16
        %v2118 = vld [vmem:[%s2117] sm:$0x3]
        %v2119 = vunpack.c.l.b16 %v2113
        %v2120 = vunpack.c.l.b16 %v2116
        %v2121 = vpack.c.b16 %v2120, %v2119
        %v2123 = vsel %vm674, %v2121, 0
        %v2126 = vsel %vm723, %v2118, 0
        %2128 = vmatpush.bf16.msra.mxu0 0
        %2129 = vmatpush.bf16.msra.mxu0 0
        %2130 = vmatpush.bf16.msra.mxu0 0
        %2131 = vmatpush.bf16.msra.mxu0 0
        %2132 = vmatpush.bf16.msra.mxu0 0
        %2133 = vmatpush.bf16.msra.mxu0 0
        %2134 = vmatpush.bf16.msra.mxu0 0
        %2135 = vmatpush.bf16.msra.mxu0 %v2126
        %2136 = vmatmul.bf16.gmra.mxu0 %v1224
        %v2137 = vpop.f32.mrf.mxu0
        %v2138 = vadd.f32 0.0, %v2137
        %v2139 = vpop.f32.mrf.mxu0
        %v2140 = vadd.f32 0.0, %v2139
        %2141 = vmatmul.bf16.gmra.mxu0 %v1227
        %v2142 = vpop.f32.mrf.mxu0
        %v2143 = vadd.f32 0.0, %v2142
        %v2144 = vpop.f32.mrf.mxu0
        %v2145 = vadd.f32 0.0, %v2144
        %2146 = vmatmul.bf16.gmra.mxu0 %v1230
        %v2147 = vpop.f32.mrf.mxu0
        %v2148 = vadd.f32 0.0, %v2147
        %v2149 = vpop.f32.mrf.mxu0
        %v2150 = vadd.f32 0.0, %v2149
        %2151 = vmatmul.bf16.gmra.mxu0 %v1233
        %v2152 = vpop.f32.mrf.mxu0
        %v2153 = vadd.f32 0.0, %v2152
        %v2154 = vpop.f32.mrf.mxu0
        %v2155 = vadd.f32 0.0, %v2154
        %2156 = vmatmul.bf16.gmra.mxu0 %v1236
        %v2157 = vpop.f32.mrf.mxu0
        %v2158 = vadd.f32 0.0, %v2157
        %v2159 = vpop.f32.mrf.mxu0
        %v2160 = vadd.f32 0.0, %v2159
        %2161 = vmatmul.bf16.gmra.mxu0 %v1239
        %v2162 = vpop.f32.mrf.mxu0
        %v2163 = vadd.f32 0.0, %v2162
        %v2164 = vpop.f32.mrf.mxu0
        %v2165 = vadd.f32 0.0, %v2164
        %2166 = vmatmul.bf16.gmra.mxu0 %v1242
        %v2167 = vpop.f32.mrf.mxu0
        %v2168 = vadd.f32 0.0, %v2167
        %v2169 = vpop.f32.mrf.mxu0
        %v2170 = vadd.f32 0.0, %v2169
        %2171 = vmatmul.bf16.gmra.mxu0 %v1245
        %v2172 = vpop.f32.mrf.mxu0
        %v2173 = vadd.f32 0.0, %v2172
        %v2174 = vpop.f32.mrf.mxu0
        %v2175 = vadd.f32 0.0, %v2174
        %2176 = vmatmul.bf16.gmra.mxu0 %v1248
        %v2177 = vpop.f32.mrf.mxu0
        %v2178 = vadd.f32 0.0, %v2177
        %v2179 = vpop.f32.mrf.mxu0
        %v2180 = vadd.f32 0.0, %v2179
        %2181 = vmatmul.bf16.gmra.mxu0 %v1251
        %v2182 = vpop.f32.mrf.mxu0
        %v2183 = vadd.f32 0.0, %v2182
        %v2184 = vpop.f32.mrf.mxu0
        %v2185 = vadd.f32 0.0, %v2184
        %2186 = vmatmul.bf16.gmra.mxu0 %v1254
        %v2187 = vpop.f32.mrf.mxu0
        %v2188 = vadd.f32 0.0, %v2187
        %v2189 = vpop.f32.mrf.mxu0
        %v2190 = vadd.f32 0.0, %v2189
        %2191 = vmatmul.bf16.gmra.mxu0 %v1257
        %v2192 = vpop.f32.mrf.mxu0
        %v2193 = vadd.f32 0.0, %v2192
        %v2194 = vpop.f32.mrf.mxu0
        %v2195 = vadd.f32 0.0, %v2194
        %2196 = vmatmul.bf16.gmra.mxu0 %v1260
        %v2197 = vpop.f32.mrf.mxu0
        %v2198 = vadd.f32 0.0, %v2197
        %v2199 = vpop.f32.mrf.mxu0
        %v2200 = vadd.f32 0.0, %v2199
        %2201 = vmatmul.bf16.gmra.mxu0 %v1263
        %v2202 = vpop.f32.mrf.mxu0
        %v2203 = vadd.f32 0.0, %v2202
        %v2204 = vpop.f32.mrf.mxu0
        %v2205 = vadd.f32 0.0, %v2204
        %2206 = vmatmul.bf16.gmra.mxu0 %v1693
        %v2207 = vpop.f32.mrf.mxu0
        %v2208 = vadd.f32 0.0, %v2207
        %v2209 = vpop.f32.mrf.mxu0
        %v2210 = vadd.f32 0.0, %v2209
        %2211 = vmatmul.bf16.gmra.mxu0 %v2123
        %v2212 = vpop.f32.mrf.mxu0
        %v2213 = vadd.f32 0.0, %v2212
        %v2214 = vpop.f32.mrf.mxu0
        %v2215 = vadd.f32 0.0, %v2214
        %2216 = vdwg.mxu0
        %v2217 = vadd.f32 %v2077, %v2138
        %v2218 = vadd.f32 %v2078, %v2140
        %v2219 = vadd.f32 %v2079, %v2143
        %v2220 = vadd.f32 %v2080, %v2145
        %v2221 = vadd.f32 %v2081, %v2148
        %v2222 = vadd.f32 %v2082, %v2150
        %v2223 = vadd.f32 %v2083, %v2153
        %v2224 = vadd.f32 %v2084, %v2155
        %v2225 = vadd.f32 %v2085, %v2158
        %v2226 = vadd.f32 %v2086, %v2160
        %v2227 = vadd.f32 %v2087, %v2163
        %v2228 = vadd.f32 %v2088, %v2165
        %v2229 = vadd.f32 %v2089, %v2168
        %v2230 = vadd.f32 %v2090, %v2170
        %v2231 = vadd.f32 %v2091, %v2173
        %v2232 = vadd.f32 %v2092, %v2175
        %v2233 = vadd.f32 %v2093, %v2178
        %v2234 = vadd.f32 %v2094, %v2180
        %v2235 = vadd.f32 %v2095, %v2183
        %v2236 = vadd.f32 %v2096, %v2185
        %v2237 = vadd.f32 %v2097, %v2188
        %v2238 = vadd.f32 %v2098, %v2190
        %v2239 = vadd.f32 %v2099, %v2193
        %v2240 = vadd.f32 %v2100, %v2195
        %v2241 = vadd.f32 %v2101, %v2198
        %v2242 = vadd.f32 %v2102, %v2200
        %v2243 = vadd.f32 %v2103, %v2203
        %v2244 = vadd.f32 %v2104, %v2205
        %v2245 = vadd.f32 %v2105, %v2208
        %v2246 = vadd.f32 %v2106, %v2210
        %v2247 = vadd.f32 %v2107, %v2213
        %v2248 = vadd.f32 %v2108, %v2215
        %v2249 = vadd.f32 %v2217, %v2218
        %v2250 = vadd.f32 %v2249, %v2219
        %v2251 = vadd.f32 %v2250, %v2220
        %v2252 = vadd.f32 %v2251, %v2221
        %v2253 = vadd.f32 %v2252, %v2222
        %v2254 = vadd.f32 %v2253, %v2223
        %v2255 = vadd.f32 %v2254, %v2224
        %v2256 = vadd.f32 %v2255, %v2225
        %v2257 = vadd.f32 %v2256, %v2226
        %v2258 = vadd.f32 %v2257, %v2227
        %v2259 = vadd.f32 %v2258, %v2228
        %v2260 = vadd.f32 %v2259, %v2229
        %v2261 = vadd.f32 %v2260, %v2230
        %v2262 = vadd.f32 %v2261, %v2231
        %v2263 = vadd.f32 %v2262, %v2232
        %v2264 = vadd.f32 %v2263, %v2233
        %v2265 = vadd.f32 %v2264, %v2234
        %v2266 = vadd.f32 %v2265, %v2235
        %v2267 = vadd.f32 %v2266, %v2236
        %v2268 = vadd.f32 %v2267, %v2237
        %v2269 = vadd.f32 %v2268, %v2238
        %v2270 = vadd.f32 %v2269, %v2239
        %v2271 = vadd.f32 %v2270, %v2240
        %v2272 = vadd.f32 %v2271, %v2241
        %v2273 = vadd.f32 %v2272, %v2242
        %v2274 = vadd.f32 %v2273, %v2243
        %v2275 = vadd.f32 %v2274, %v2244
        %v2276 = vadd.f32 %v2275, %v2245
        %v2277 = vadd.f32 %v2276, %v2246
        %v2278 = vadd.f32 %v2277, %v2247
        %v2279 = vadd.f32 %v2278, %v2248
        %v2280 = vrot.slane %v2279, 4
        %v2281 = vadd.f32 %v2279, %v2280
        %v2282 = vrot.slane %v2281, 2
        %v2283 = vadd.f32 %v2281, %v2282
        %v2284 = vrot.slane %v2283, 1
        %v2285 = vadd.f32 %v2283, %v2284
        %2286 = vst [vmem:[%s174] sm:$0x1] %v2285
        %v2287 = vmul.f32 %v2217, %v2217
        %v2288 = vmul.f32 %v2218, %v2218
        %v2289 = vmul.f32 %v2219, %v2219
        %v2290 = vmul.f32 %v2220, %v2220
        %v2291 = vmul.f32 %v2221, %v2221
        %v2292 = vmul.f32 %v2222, %v2222
        %v2293 = vmul.f32 %v2223, %v2223
        %v2294 = vmul.f32 %v2224, %v2224
        %v2295 = vmul.f32 %v2225, %v2225
        %v2296 = vmul.f32 %v2226, %v2226
        %v2297 = vmul.f32 %v2227, %v2227
        %v2298 = vmul.f32 %v2228, %v2228
        %v2299 = vmul.f32 %v2229, %v2229
        %v2300 = vmul.f32 %v2230, %v2230
        %v2301 = vmul.f32 %v2231, %v2231
        %v2302 = vmul.f32 %v2232, %v2232
        %v2303 = vmul.f32 %v2233, %v2233
        %v2304 = vmul.f32 %v2234, %v2234
        %v2305 = vmul.f32 %v2235, %v2235
        %v2306 = vmul.f32 %v2236, %v2236
        %v2307 = vmul.f32 %v2237, %v2237
        %v2308 = vmul.f32 %v2238, %v2238
        %v2309 = vmul.f32 %v2239, %v2239
        %v2310 = vmul.f32 %v2240, %v2240
        %v2311 = vmul.f32 %v2241, %v2241
        %v2312 = vmul.f32 %v2242, %v2242
        %v2313 = vmul.f32 %v2243, %v2243
        %v2314 = vmul.f32 %v2244, %v2244
        %v2315 = vmul.f32 %v2245, %v2245
        %v2316 = vmul.f32 %v2246, %v2246
        %v2317 = vmul.f32 %v2247, %v2247
        %v2318 = vmul.f32 %v2248, %v2248
        %v2319 = vadd.f32 %v2287, %v2288
        %v2320 = vadd.f32 %v2319, %v2289
        %v2321 = vadd.f32 %v2320, %v2290
        %v2322 = vadd.f32 %v2321, %v2291
        %v2323 = vadd.f32 %v2322, %v2292
        %v2324 = vadd.f32 %v2323, %v2293
        %v2325 = vadd.f32 %v2324, %v2294
        %v2326 = vadd.f32 %v2325, %v2295
        %v2327 = vadd.f32 %v2326, %v2296
        %v2328 = vadd.f32 %v2327, %v2297
        %v2329 = vadd.f32 %v2328, %v2298
        %v2330 = vadd.f32 %v2329, %v2299
        %v2331 = vadd.f32 %v2330, %v2300
        %v2332 = vadd.f32 %v2331, %v2301
        %v2333 = vadd.f32 %v2332, %v2302
        %v2334 = vadd.f32 %v2333, %v2303
        %v2335 = vadd.f32 %v2334, %v2304
        %v2336 = vadd.f32 %v2335, %v2305
        %v2337 = vadd.f32 %v2336, %v2306
        %v2338 = vadd.f32 %v2337, %v2307
        %v2339 = vadd.f32 %v2338, %v2308
        %v2340 = vadd.f32 %v2339, %v2309
        %v2341 = vadd.f32 %v2340, %v2310
        %v2342 = vadd.f32 %v2341, %v2311
        %v2343 = vadd.f32 %v2342, %v2312
        %v2344 = vadd.f32 %v2343, %v2313
        %v2345 = vadd.f32 %v2344, %v2314
        %v2346 = vadd.f32 %v2345, %v2315
        %v2347 = vadd.f32 %v2346, %v2316
        %v2348 = vadd.f32 %v2347, %v2317
        %v2349 = vadd.f32 %v2348, %v2318
        %v2350 = vrot.slane %v2349, 4
        %v2351 = vadd.f32 %v2349, %v2350
        %v2352 = vrot.slane %v2351, 2
        %v2353 = vadd.f32 %v2351, %v2352
        %v2354 = vrot.slane %v2353, 1
        %v2355 = vadd.f32 %v2353, %v2354
        %2356 = vst [vmem:[%s174 + $0x1] sm:$0x1] %v2355
        %v2357 = vpack.c.bf16 %v2217, %v2217
        %v2358 = vpack.c.bf16 %v2218, %v2218
        %v2359 = vpack.c.bf16 %v2219, %v2219
        %v2360 = vpack.c.bf16 %v2220, %v2220
        %v2361 = vpack.c.bf16 %v2221, %v2221
        %v2362 = vpack.c.bf16 %v2222, %v2222
        %v2363 = vpack.c.bf16 %v2223, %v2223
        %v2364 = vpack.c.bf16 %v2224, %v2224
        %v2365 = vpack.c.bf16 %v2225, %v2225
        %v2366 = vpack.c.bf16 %v2226, %v2226
        %v2367 = vpack.c.bf16 %v2227, %v2227
        %v2368 = vpack.c.bf16 %v2228, %v2228
        %v2369 = vpack.c.bf16 %v2229, %v2229
        %v2370 = vpack.c.bf16 %v2230, %v2230
        %v2371 = vpack.c.bf16 %v2231, %v2231
        %v2372 = vpack.c.bf16 %v2232, %v2232
        %v2373 = vpack.c.bf16 %v2233, %v2233
        %v2374 = vpack.c.bf16 %v2234, %v2234
        %v2375 = vpack.c.bf16 %v2235, %v2235
        %v2376 = vpack.c.bf16 %v2236, %v2236
        %v2377 = vpack.c.bf16 %v2237, %v2237
        %v2378 = vpack.c.bf16 %v2238, %v2238
        %v2379 = vpack.c.bf16 %v2239, %v2239
        %v2380 = vpack.c.bf16 %v2240, %v2240
        %v2381 = vpack.c.bf16 %v2241, %v2241
        %v2382 = vpack.c.bf16 %v2242, %v2242
        %v2383 = vpack.c.bf16 %v2243, %v2243
        %v2384 = vpack.c.bf16 %v2244, %v2244
        %v2385 = vpack.c.bf16 %v2245, %v2245
        %v2386 = vpack.c.bf16 %v2246, %v2246
        %v2387 = vpack.c.bf16 %v2247, %v2247
        %v2388 = vpack.c.bf16 %v2248, %v2248
        %2389 = vst [vmem:[%s167] sm:$0xf] %v2357
        %2390 = vst [vmem:[%s167 + $0x4] sm:$0xf] %v2358
        %2391 = vst [vmem:[%s167 + $0x8] sm:$0xf] %v2359
        %2392 = vst [vmem:[%s167 + $0xc] sm:$0xf] %v2360
        %2393 = vst [vmem:[%s167 + $0x10] sm:$0xf] %v2361
        %2394 = vst [vmem:[%s167 + $0x14] sm:$0xf] %v2362
        %2395 = vst [vmem:[%s167 + $0x18] sm:$0xf] %v2363
        %2396 = vst [vmem:[%s167 + $0x1c] sm:$0xf] %v2364
        %2397 = vst [vmem:[%s167 + $0x20] sm:$0xf] %v2365
        %2398 = vst [vmem:[%s167 + $0x24] sm:$0xf] %v2366
        %2399 = vst [vmem:[%s167 + $0x28] sm:$0xf] %v2367
        %2400 = vst [vmem:[%s167 + $0x2c] sm:$0xf] %v2368
        %2401 = vst [vmem:[%s167 + $0x30] sm:$0xf] %v2369
        %2402 = vst [vmem:[%s167 + $0x34] sm:$0xf] %v2370
        %2403 = vst [vmem:[%s167 + $0x38] sm:$0xf] %v2371
        %2404 = vst [vmem:[%s167 + $0x3c] sm:$0xf] %v2372
        %2405 = vst [vmem:[%s167 + $0x40] sm:$0xf] %v2373
        %2406 = vst [vmem:[%s167 + $0x44] sm:$0xf] %v2374
        %2407 = vst [vmem:[%s167 + $0x48] sm:$0xf] %v2375
        %2408 = vst [vmem:[%s167 + $0x4c] sm:$0xf] %v2376
        %2409 = vst [vmem:[%s167 + $0x50] sm:$0xf] %v2377
        %2410 = vst [vmem:[%s167 + $0x54] sm:$0xf] %v2378
        %2411 = vst [vmem:[%s167 + $0x58] sm:$0xf] %v2379
        %2412 = vst [vmem:[%s167 + $0x5c] sm:$0xf] %v2380
        %2413 = vst [vmem:[%s167 + $0x60] sm:$0xf] %v2381
        %2414 = vst [vmem:[%s167 + $0x64] sm:$0xf] %v2382
        %2415 = vst [vmem:[%s167 + $0x68] sm:$0xf] %v2383
        %2416 = vst [vmem:[%s167 + $0x6c] sm:$0xf] %v2384
        %2417 = vst [vmem:[%s167 + $0x70] sm:$0xf] %v2385
        %2418 = vst [vmem:[%s167 + $0x74] sm:$0xf] %v2386
        %2419 = vst [vmem:[%s167 + $0x78] sm:$0xf] %v2387
        %2420 = vst [vmem:[%s167 + $0x7c] sm:$0xf] %v2388
        %s2421 = sand.u32 %s76, 1
        %s2422 = scalar_lea.sflag [#allocation3], %s2421
        %s2423 = sand.u32 %s76, 1
        %s2424 = smul.addr %s2423, 128
        %s2425 = scalar_lea.vmem [#allocation2], %s2424
        %s2426 = sand.u32 %s102, 1
        %s2427 = scalar_lea.sflag [#allocation5], %s2426
        %s2428 = sand.u32 %s102, 1
        %s2429 = smul.addr %s2428, 2
        %s2430 = scalar_lea.vmem [#allocation4], %s2429
        // Predicated region
        $region29: #{tpu_custom_call.1} parent=27 // pred_check
          %p2431 = pneg %p86
        $region30: #{tpu_custom_call.1} parent=27 // pred_check_branch
          %2433 = sbr.rel (%p2431) target = $region32
        $region31: #{tpu_custom_call.1} parent=27 // pred_region
          %s2434 = smul.u32 32, %s21
          %2436 = vsyncadd %s2422, 0
          %s2437 = smul.addr %s2434, 4
          %s2438 = scalar_lea.hbm %s2, %s2437
          %s2439 = sshll.u32 %s2425, 4
          %s2440 = int_to_ptr.vmem [resolvable:$true] %s2439
          %s2441 = sshll.u32 %s2438, 4
          %s2442 = int_to_ptr.hbm [resolvable:$true] %s2441
          %2447 = dma.vmem_to_hbm [thread:$0]  %s2440, 2048, %s2442, %s2422, 64, 64, 4
        $region32: #{tpu_custom_call.1} parent=27 // pred_fallthru
          _
        // Predicated region
        $region33: #{tpu_custom_call.1} parent=27 // pred_check
          %p2448 = pneg %p112
        $region34: #{tpu_custom_call.1} parent=27 // pred_check_branch
          %2450 = sbr.rel (%p2448) target = $region36
        $region35: #{tpu_custom_call.1} parent=27 // pred_region
          %2452 = vsyncadd %s2427, 0
          %s2453 = smul.addr %s21, 2
          %s2454 = scalar_lea.hbm %s3, %s2453
          %s2456 = sshll.u32 %s2430, 4
          %s2457 = int_to_ptr.vmem [resolvable:$true] %s2456
          %s2458 = sshll.u32 %s2454, 4
          %s2459 = int_to_ptr.hbm [resolvable:$true] %s2458
          %2461 = dma.vmem_to_hbm [thread:$0]  %s2457, 32, %s2459, %s2427
        $region36: #{tpu_custom_call.1} parent=27 // pred_fallthru
          _
      $region28: #{tpu_custom_call.1} parent=5 // pred_fallthru
        _
      %p2462 = scmp.le.s32.totalorder 2, %s16
      // Predicated region
      $region37: #{tpu_custom_call.1} parent=5 // pred_check
        %p2463 = pneg %p2462
      $region38: #{tpu_custom_call.1} parent=5 // pred_check_branch
        %2465 = sbr.rel (%p2463) target = $region40
      $region39: #{tpu_custom_call.1} parent=5 // pred_region
        %s2466 = ssub.s32 %s16, 2
        // Predicated region
        $region41: #{tpu_custom_call.1} parent=39 // pred_check
          %p2467 = pneg %p92
        $region42: #{tpu_custom_call.1} parent=39 // pred_check_branch
          %2469 = sbr.rel (%p2467) target = $region44
        $region43: #{tpu_custom_call.1} parent=39 // pred_region
          %s2470 = sand.u32 %s77, 1
          %s2471 = scalar_lea.sflag [#allocation3], %s2470
          %s2472 = sand.u32 %s77, 1
          %s2473 = smul.addr %s2472, 128
          %s2474 = scalar_lea.vmem [#allocation2], %s2473
          %2476 = dma.done %s2471, 2048
        $region44: #{tpu_custom_call.1} parent=39 // pred_fallthru
          _
        // Predicated region
        $region45: #{tpu_custom_call.1} parent=39 // pred_check
          %p2477 = pneg %p118
        $region46: #{tpu_custom_call.1} parent=39 // pred_check_branch
          %2479 = sbr.rel (%p2477) target = $region48
        $region47: #{tpu_custom_call.1} parent=39 // pred_region
          %s2480 = sand.u32 %s103, 1
          %s2481 = scalar_lea.sflag [#allocation5], %s2480
          %s2482 = sand.u32 %s103, 1
          %s2483 = smul.addr %s2482, 2
          %s2484 = scalar_lea.vmem [#allocation4], %s2483
          %2486 = dma.done %s2481, 32
        $region48: #{tpu_custom_call.1} parent=39 // pred_fallthru
          _
      $region40: #{tpu_custom_call.1} parent=5 // pred_fallthru
        _
    $region6: #{tpu_custom_call.1} parent=1 // loop_footer
      %s20 = sadd.s32 1, %s16
    $region7: #{tpu_custom_call.1} parent=1 // loop_footer_branch
      %15 = sbr.rel target = $region3
    $region8: #{tpu_custom_call.1} parent=1 // loop_exit
      _
    %2487 = vsyncpa [#allocation3], 1
    %s2488 = scalar_lea.sflag [#allocation3], 1
    %2489 = vsyncpa %s2488, 1
    %2490 = vsyncpa [#allocation5], 1
    %s2491 = scalar_lea.sflag [#allocation5], 1
    %2492 = vsyncpa %s2491, 1

</llo_original>
